<compile_context>
chip_gen: v7x
topology: tpu7x:2x2x1
jax: 0.10.0
libtpu: 0.0.40
codegen_flags: <defaults>
</compile_context>

<pallas_src>
import jax
import jax.numpy as jnp
from jax.experimental import pallas as pl
from jax.experimental.pallas import tpu as pltpu

_LANE = 128


def _round_up(x, m):
    return (x + m - 1) // m * m


def _mlp_kernel(x_ref, w1_ref, b1_ref, w2_ref, b2_ref, wh_ref, bh_ref, out_ref):
    """Fused 3-layer MLP body.

    Layer 1 (tiny K) runs on the VPU as broadcast-MACs in f32; layer 2 and the
    fused (means|stds) head run on the MXU in bf16 with f32 accumulation.  The
    raw head is stored as one lane-dense [block_b, 128] bf16 tile; the
    tanh/softplus epilogue is applied in the wrapper on the sliced outputs.
    """
    state_dims = w1_ref.shape[0]

    if state_dims <= 16:
        # VPU path: skip the MXU for the pathological K=state_dims matmul.
        x = x_ref[...]                                   # f32 [bb, state_dims]
        h1 = b1_ref[...]                                 # f32 [1, hidden] -> bcast
        for k in range(state_dims):                      # static unroll (tiny)
            h1 = h1 + x[:, k:k + 1] * w1_ref[k:k + 1, :]
    else:
        # Fallback for large state_dims: regular MXU matmul.
        xb = x_ref[...].astype(jnp.bfloat16)
        h1 = jnp.dot(xb, w1_ref[...].astype(jnp.bfloat16),
                     preferred_element_type=jnp.float32) + b1_ref[...]
    h1 = jnp.maximum(h1, 0.0).astype(jnp.bfloat16)

    h2 = jnp.dot(h1, w2_ref[...], preferred_element_type=jnp.float32) + b2_ref[...]
    h2 = jnp.maximum(h2, 0.0).astype(jnp.bfloat16)

    # Fused heads: one [hidden, 128-padded] matmul -> single lane-dense store.
    head = jnp.dot(h2, wh_ref[...], preferred_element_type=jnp.float32) + bh_ref[...]
    out_ref[...] = head.astype(out_ref.dtype)


def reinforce_model_continuous_forward(x, params, num_actions, *, block_b=None):
    """params: dict with f32 w1/biases, bf16 w2, and bf16 fused+lane-padded
    head weights wh (all weights pre-transposed to [in, out])."""
    B, state_dims = x.shape
    hidden = params["w1"].shape[1]
    head_p = params["wh"].shape[1]  # multiple of 128

    # Single grid step for small/medium batches (sublane-aligned); only tile
    # the batch once it exceeds 512 rows.  b_pad grows by at most one block.
    if block_b is None:
        block_b = 512
    block_b_eff = min(block_b, _round_up(B, 8))
    b_pad = _round_up(B, block_b_eff)
    if b_pad != B:
        x = jnp.pad(x, ((0, b_pad - B), (0, 0)))
    grid = (b_pad // block_b_eff,)

    full = lambda shape: pl.BlockSpec(shape, lambda i: (0, 0))
    in_specs = [
        pl.BlockSpec((block_b_eff, state_dims), lambda i: (i, 0)),  # x (f32, batch-tiled)
        full((state_dims, hidden)),                                 # w1 (f32, VPU)
        full((1, hidden)),                                          # b1 (f32)
        full((hidden, hidden)),                                     # w2 (bf16, MXU)
        full((1, hidden)),                                          # b2 (f32)
        full((hidden, head_p)),                                     # wh (bf16, fused heads)
        full((1, head_p)),                                          # bh (f32)
    ]
    out_specs = pl.BlockSpec((block_b_eff, head_p), lambda i: (i, 0))
    out_shape = jax.ShapeDtypeStruct((b_pad, head_p), jnp.bfloat16)

    fn = pl.pallas_call(
        _mlp_kernel,
        grid=grid,
        in_specs=in_specs,
        out_specs=out_specs,
        out_shape=out_shape,
        compiler_params=pltpu.CompilerParams(
            dimension_semantics=("parallel",)),
    )
    out = fn(x, params["w1"], params["b1"], params["w2"], params["b2"],
             params["wh"], params["bh"])

    # Cheap epilogue on the tiny useful slice only (2*num_actions lanes of B rows).
    head = out[:B, :2 * num_actions].astype(jnp.float32)
    means = jnp.tanh(head[:, :num_actions])
    stds = jax.nn.softplus(head[:, num_actions:2 * num_actions])
    return means, stds


def init_params(key, state_dims=2, hidden=512, num_actions=1):
    """PyTorch-style init U(-1/sqrt(fan_in), 1/sqrt(fan_in)); weights stored as
    [in, out] (transposed vs nn.Linear).  w1 stays f32 (VPU layer-1 path);
    w2 and the fused, lane-padded heads are bf16 for the MXU."""
    def linear(k, fan_in, fan_out):
        kw, kb = jax.random.split(k)
        bound = 1.0 / jnp.sqrt(fan_in)
        w = jax.random.uniform(kw, (fan_in, fan_out), jnp.float32, -bound, bound)
        b = jax.random.uniform(kb, (1, fan_out), jnp.float32, -bound, bound)
        return w, b

    k1, k2, k3, k4 = jax.random.split(key, 4)
    w1, b1 = linear(k1, state_dims, hidden)
    w2, b2 = linear(k2, hidden, hidden)
    w3, b3 = linear(k3, hidden, num_actions)   # means head
    ws, bs = linear(k4, hidden, num_actions)   # stds head

    head_p = _round_up(2 * num_actions, _LANE)
    wh = (jnp.zeros((hidden, head_p), jnp.float32)
          .at[:, :num_actions].set(w3)
          .at[:, num_actions:2 * num_actions].set(ws))
    bh = (jnp.zeros((1, head_p), jnp.float32)
          .at[:, :num_actions].set(b3)
          .at[:, num_actions:2 * num_actions].set(bs))

    return dict(
        w1=w1, b1=b1,                          # f32 (VPU path)
        w2=w2.astype(jnp.bfloat16), b2=b2,     # bf16 MXU operand, f32 bias
        wh=wh.astype(jnp.bfloat16), bh=bh,
    )


def _reference_forward(x, p, num_actions):
    # Pure-JAX f32 reference using the same (bf16-quantized where applicable) weights.
    w1 = p["w1"].astype(jnp.float32)
    w2 = p["w2"].astype(jnp.float32)
    wh = p["wh"].astype(jnp.float32)
    h1 = jnp.maximum(x @ w1 + p["b1"], 0.0)
    h2 = jnp.maximum(h1 @ w2 + p["b2"], 0.0)
    head = h2 @ wh + p["bh"]
    means = jnp.tanh(head[:, :num_actions])
    stds = jax.nn.softplus(head[:, num_actions:2 * num_actions])
    return means, stds


if __name__ == "__main__":
    key = jax.random.PRNGKey(0)
    kx, kp = jax.random.split(key)

    # hidden=512 is fixed by the module; keep the batch small.
    B, state_dims, hidden, num_actions = 64, 2, 512, 1
    x = jax.random.normal(kx, (B, state_dims), dtype=jnp.float32)
    params = init_params(kp, state_dims=state_dims, hidden=hidden,
                         num_actions=num_actions)

    # Single grid step (default block_b): the whole problem is ~1 us of work.
    means, stds = reinforce_model_continuous_forward(x, params, num_actions)
    jax.block_until_ready((means, stds))

    # Sanity check against a pure-JAX reference (bf16 matmul/store -> loose tol).
    ref_means, ref_stds = _reference_forward(x, params, num_actions)
    assert means.shape == (B, num_actions) and stds.shape == (B, num_actions)
    assert jnp.allclose(means, ref_means, atol=5e-2, rtol=5e-2)
    assert jnp.allclose(stds, ref_stds, atol=5e-2, rtol=5e-2)
    assert bool(jnp.all(stds > 0.0))

    print("KERNEL_OK")
</pallas_src>

<mosaic_0001>
module attributes {stable_mosaic.version = 11 : i64} {
  func.func @_mlp_kernel(%arg0: i32, %arg1: memref<64x2xf32, #tpu.memory_space<vmem>>, %arg2: memref<2x512xf32, #tpu.memory_space<vmem>>, %arg3: memref<1x512xf32, #tpu.memory_space<vmem>>, %arg4: memref<512x512xbf16, #tpu.memory_space<vmem>>, %arg5: memref<1x512xf32, #tpu.memory_space<vmem>>, %arg6: memref<512x128xbf16, #tpu.memory_space<vmem>>, %arg7: memref<1x128xf32, #tpu.memory_space<vmem>>, %arg8: memref<64x128xbf16, #tpu.memory_space<vmem>>) attributes {dimension_semantics = [#tpu.dimension_semantics<parallel>], iteration_bounds = array<i64: 1>, scalar_prefetch = 0 : i64, scratch_operands = 0 : i64, tpu.core_type = #tpu.core_type<tc>, window_params = [{transform_indices = @transform_0, window_bounds = array<i64: 64, 2>}, {pipeline_mode = #tpu.pipeline_mode<synchronous>, transform_indices = @transform_1, window_bounds = array<i64: 2, 512>}, {pipeline_mode = #tpu.pipeline_mode<synchronous>, transform_indices = @transform_2, window_bounds = array<i64: 1, 512>}, {pipeline_mode = #tpu.pipeline_mode<synchronous>, transform_indices = @transform_3, window_bounds = array<i64: 512, 512>}, {pipeline_mode = #tpu.pipeline_mode<synchronous>, transform_indices = @transform_4, window_bounds = array<i64: 1, 512>}, {pipeline_mode = #tpu.pipeline_mode<synchronous>, transform_indices = @transform_5, window_bounds = array<i64: 512, 128>}, {pipeline_mode = #tpu.pipeline_mode<synchronous>, transform_indices = @transform_6, window_bounds = array<i64: 1, 128>}, {transform_indices = @transform_7, window_bounds = array<i64: 64, 128>}]} {
    %c0 = arith.constant 0 : index
    %c0_0 = arith.constant 0 : index
    %0 = vector.load %arg1[%c0, %c0_0] : memref<64x2xf32, #tpu.memory_space<vmem>>, vector<64x2xf32>
    %c0_1 = arith.constant 0 : index
    %c0_2 = arith.constant 0 : index
    %1 = vector.load %arg3[%c0_1, %c0_2] : memref<1x512xf32, #tpu.memory_space<vmem>>, vector<1x512xf32>
    %2 = vector.extract_strided_slice %0 {offsets = [0, 0], sizes = [64, 1], strides = [1, 1]} : vector<64x2xf32> to vector<64x1xf32>
    %c0_3 = arith.constant 0 : index
    %c0_4 = arith.constant 0 : index
    %3 = vector.load %arg2[%c0_3, %c0_4] : memref<2x512xf32, #tpu.memory_space<vmem>>, vector<1x512xf32>
    %4 = vector.broadcast %2 : vector<64x1xf32> to vector<64x512xf32>
    %5 = vector.broadcast %3 : vector<1x512xf32> to vector<64x512xf32>
    %6 = arith.mulf %4, %5 : vector<64x512xf32>
    %7 = vector.broadcast %1 : vector<1x512xf32> to vector<64x512xf32>
    %8 = arith.addf %7, %6 : vector<64x512xf32>
    %9 = vector.extract_strided_slice %0 {offsets = [0, 1], sizes = [64, 1], strides = [1, 1]} : vector<64x2xf32> to vector<64x1xf32>
    %c1 = arith.constant 1 : index
    %c0_5 = arith.constant 0 : index
    %10 = vector.load %arg2[%c1, %c0_5] : memref<2x512xf32, #tpu.memory_space<vmem>>, vector<1x512xf32>
    %11 = vector.broadcast %9 : vector<64x1xf32> to vector<64x512xf32>
    %12 = vector.broadcast %10 : vector<1x512xf32> to vector<64x512xf32>
    %13 = arith.mulf %11, %12 : vector<64x512xf32>
    %14 = arith.addf %8, %13 : vector<64x512xf32>
    %cst = arith.constant 0.000000e+00 : f32
    %15 = vector.broadcast %cst : f32 to vector<64x512xf32>
    %16 = arith.maximumf %14, %15 : vector<64x512xf32>
    %17 = arith.truncf %16 : vector<64x512xf32> to vector<64x512xbf16>
    %c0_6 = arith.constant 0 : index
    %c0_7 = arith.constant 0 : index
    %18 = vector.load %arg4[%c0_6, %c0_7] : memref<512x512xbf16, #tpu.memory_space<vmem>>, vector<512x512xbf16>
    %cst_8 = arith.constant dense<0.000000e+00> : vector<64x512xf32>
    %19 = tpu.matmul %17, %18, %cst_8 {dimension_numbers = #tpu.dot_dimension_numbers<[1], [0], [0], [1], [0, 0, 1, 1], [], []>} : vector<64x512xbf16>, vector<512x512xbf16>, vector<64x512xf32> -> vector<64x512xf32>
    %c0_9 = arith.constant 0 : index
    %c0_10 = arith.constant 0 : index
    %20 = vector.load %arg5[%c0_9, %c0_10] : memref<1x512xf32, #tpu.memory_space<vmem>>, vector<1x512xf32>
    %21 = vector.broadcast %20 : vector<1x512xf32> to vector<64x512xf32>
    %22 = arith.addf %19, %21 : vector<64x512xf32>
    %cst_11 = arith.constant 0.000000e+00 : f32
    %23 = vector.broadcast %cst_11 : f32 to vector<64x512xf32>
    %24 = arith.maximumf %22, %23 : vector<64x512xf32>
    %25 = arith.truncf %24 : vector<64x512xf32> to vector<64x512xbf16>
    %c0_12 = arith.constant 0 : index
    %c0_13 = arith.constant 0 : index
    %26 = vector.load %arg6[%c0_12, %c0_13] : memref<512x128xbf16, #tpu.memory_space<vmem>>, vector<512x128xbf16>
    %cst_14 = arith.constant dense<0.000000e+00> : vector<64x128xf32>
    %27 = tpu.matmul %25, %26, %cst_14 {dimension_numbers = #tpu.dot_dimension_numbers<[1], [0], [0], [1], [0, 0, 1, 1], [], []>} : vector<64x512xbf16>, vector<512x128xbf16>, vector<64x128xf32> -> vector<64x128xf32>
    %c0_15 = arith.constant 0 : index
    %c0_16 = arith.constant 0 : index
    %28 = vector.load %arg7[%c0_15, %c0_16] : memref<1x128xf32, #tpu.memory_space<vmem>>, vector<1x128xf32>
    %29 = vector.broadcast %28 : vector<1x128xf32> to vector<64x128xf32>
    %30 = arith.addf %27, %29 : vector<64x128xf32>
    %31 = arith.truncf %30 : vector<64x128xf32> to vector<64x128xbf16>
    %c0_17 = arith.constant 0 : index
    %c0_18 = arith.constant 0 : index
    %32 = vector.load %arg8[%c0_17, %c0_18] : memref<64x128xbf16, #tpu.memory_space<vmem>>, vector<64x128xbf16>
    tpu.vector_store %arg8[%c0_17, %c0_18], %31 {strides = array<i32>} : memref<64x128xbf16, #tpu.memory_space<vmem>>, vector<64x128xbf16>,
    return
  }
  func.func @transform_0(%arg0: i32) -> (i32, i32) {
    %c0_i32 = arith.constant 0 : i32
    %c0_i32_0 = arith.constant 0 : i32
    return %arg0, %c0_i32 : i32, i32
  }
  func.func @transform_1(%arg0: i32) -> (i32, i32) {
    %c0_i32 = arith.constant 0 : i32
    %c0_i32_0 = arith.constant 0 : i32
    %c0_i32_1 = arith.constant 0 : i32
    return %c0_i32, %c0_i32_0 : i32, i32
  }
  func.func @transform_2(%arg0: i32) -> (i32, i32) {
    %c0_i32 = arith.constant 0 : i32
    %c0_i32_0 = arith.constant 0 : i32
    %c0_i32_1 = arith.constant 0 : i32
    return %c0_i32, %c0_i32_0 : i32, i32
  }
  func.func @transform_3(%arg0: i32) -> (i32, i32) {
    %c0_i32 = arith.constant 0 : i32
    %c0_i32_0 = arith.constant 0 : i32
    %c0_i32_1 = arith.constant 0 : i32
    return %c0_i32, %c0_i32_0 : i32, i32
  }
  func.func @transform_4(%arg0: i32) -> (i32, i32) {
    %c0_i32 = arith.constant 0 : i32
    %c0_i32_0 = arith.constant 0 : i32
    %c0_i32_1 = arith.constant 0 : i32
    return %c0_i32, %c0_i32_0 : i32, i32
  }
  func.func @transform_5(%arg0: i32) -> (i32, i32) {
    %c0_i32 = arith.constant 0 : i32
    %c0_i32_0 = arith.constant 0 : i32
    %c0_i32_1 = arith.constant 0 : i32
    return %c0_i32, %c0_i32_0 : i32, i32
  }
  func.func @transform_6(%arg0: i32) -> (i32, i32) {
    %c0_i32 = arith.constant 0 : i32
    %c0_i32_0 = arith.constant 0 : i32
    %c0_i32_1 = arith.constant 0 : i32
    return %c0_i32, %c0_i32_0 : i32, i32
  }
  func.func @transform_7(%arg0: i32) -> (i32, i32) {
    %c0_i32 = arith.constant 0 : i32
    %c0_i32_0 = arith.constant 0 : i32
    return %arg0, %c0_i32 : i32, i32
  }
}

</mosaic_0001>

<llo_original>
// kernel: tpu_custom_call.1
$region0: #{tpu_custom_call.1}
  #allocation0 [shape = 'u32[]', space=smem, size = 0x4, offset = 0x4, fixed_abs, tag = 'smem constant byte address 0x4 - core index']
  #allocation1 [shape = 'u32[144,128]{1,0:T(1,128)}', space=vmem, size = 0x12000, scoped, tag = 'internal scratch']
  %s0 = inlined_call_operand.vmem [shape: f32[64,2], index: 0, kind: input, shape index: {}]
  %s1 = inlined_call_operand.vmem [shape: f32[2,512], index: 1, kind: input, shape index: {}]
  %s2 = inlined_call_operand.vmem [shape: f32[1,512], index: 2, kind: input, shape index: {}]
  %s3 = inlined_call_operand.hbm [shape: bf16[512,512], index: 3, kind: input, shape index: {}]
  %s4 = inlined_call_operand.vmem [shape: f32[1,512], index: 4, kind: input, shape index: {}]
  %s5 = inlined_call_operand.hbm [shape: bf16[512,128], index: 5, kind: input, shape index: {}]
  %s6 = inlined_call_operand.vmem [shape: f32[1,128], index: 6, kind: input, shape index: {}]
  %s7 = inlined_call_operand.hbm [shape: bf16[64,128], index: 7, kind: output, shape index: {}]
  %s8 = sld [smem:[#allocation0]]
  $region46: #{tpu_custom_call.1} parent=0
    _
  %s10 = ssub.s32 1, %s8
  %s11 = scalar_select 0, %s10, %s8
  $region1: #{tpu_custom_call.1} parent=0
    #allocation2 [shape = 'u8[524288]{0}', space=vmem, size = 0x80000, scoped, tag = 'input window, operand 3, single buffered']
    #allocation3 [shape = 's32[1]{0}', space=sflag, size = 0x4, scoped, tag = 'scoped memory for tpu_custom_call.1']
    #allocation4 [shape = 's32[1]{0}', space=sflag, size = 0x4, scoped, tag = 'scoped memory for tpu_custom_call.1']
    #allocation5 [shape = 'u8[131072]{0}', space=vmem, size = 0x20000, scoped, tag = 'input window, operand 5, single buffered']
    #allocation6 [shape = 's32[1]{0}', space=sflag, size = 0x4, scoped, tag = 'scoped memory for tpu_custom_call.1']
    #allocation7 [shape = 'u8[16384]{0}', space=vmem, size = 0x4000, scoped, tag = 'output window, operand 0, single buffered']
    %12 = vsyncpa [#allocation3], 0
    %13 = vsyncpa [#allocation6], 0
    %14 = vsyncpa [#allocation4], 0
    // Predicated region
    $region2: #{tpu_custom_call.1} parent=1 // pred_check
      _
    $region3: #{tpu_custom_call.1} parent=1 // pred_check_branch
      %16 = sbr.rel (0) target = $region5
    $region4: #{tpu_custom_call.1} parent=1 // pred_region
      _
    $region5: #{tpu_custom_call.1} parent=1 // pred_fallthru
      _
    // Predicated region
    $region6: #{tpu_custom_call.1} parent=1 // pred_check
      _
    $region7: #{tpu_custom_call.1} parent=1 // pred_check_branch
      %18 = sbr.rel (0) target = $region9
    $region8: #{tpu_custom_call.1} parent=1 // pred_region
      _
    $region9: #{tpu_custom_call.1} parent=1 // pred_fallthru
      _
    // Predicated region
    $region10: #{tpu_custom_call.1} parent=1 // pred_check
      _
    $region11: #{tpu_custom_call.1} parent=1 // pred_check_branch
      %20 = sbr.rel (0) target = $region13
    $region12: #{tpu_custom_call.1} parent=1 // pred_region
      _
    $region13: #{tpu_custom_call.1} parent=1 // pred_fallthru
      _
    // Predicated region
    $region14: #{tpu_custom_call.1} parent=1 // pred_check
      _
    $region15: #{tpu_custom_call.1} parent=1 // pred_check_branch
      %22 = sbr.rel (0) target = $region17
    $region16: #{tpu_custom_call.1} parent=1 // pred_region
      %s24 = ssub.s32 16384, 16384
      %25 = vsyncadd [#allocation3], %s24
      %s26 = sshll.u32 [#allocation2], 4
      %s27 = int_to_ptr.vmem [resolvable:$true] %s26
      %32 = dma.hbm_to_vmem [thread:$0]  %s3, 16384, %s27, [#allocation3], 256, 256, 16
    $region17: #{tpu_custom_call.1} parent=1 // pred_fallthru
      _
    // Predicated region
    $region18: #{tpu_custom_call.1} parent=1 // pred_check
      _
    $region19: #{tpu_custom_call.1} parent=1 // pred_check_branch
      %34 = sbr.rel (0) target = $region21
    $region20: #{tpu_custom_call.1} parent=1 // pred_region
      _
    $region21: #{tpu_custom_call.1} parent=1 // pred_fallthru
      _
    // Predicated region
    $region22: #{tpu_custom_call.1} parent=1 // pred_check
      _
    $region23: #{tpu_custom_call.1} parent=1 // pred_check_branch
      %36 = sbr.rel (0) target = $region25
    $region24: #{tpu_custom_call.1} parent=1 // pred_region
      %s38 = ssub.s32 4096, 4096
      %39 = vsyncadd [#allocation6], %s38
      %s40 = sshll.u32 [#allocation5], 4
      %s41 = int_to_ptr.vmem [resolvable:$true] %s40
      %46 = dma.hbm_to_vmem [thread:$0]  %s5, 4096, %s41, [#allocation6], 64, 64, 4
    $region25: #{tpu_custom_call.1} parent=1 // pred_fallthru
      _
    // Predicated region
    $region26: #{tpu_custom_call.1} parent=1 // pred_check
      _
    $region27: #{tpu_custom_call.1} parent=1 // pred_check_branch
      %48 = sbr.rel (0) target = $region29
    $region28: #{tpu_custom_call.1} parent=1 // pred_region
      _
    $region29: #{tpu_custom_call.1} parent=1 // pred_fallthru
      _
    // Predicated region
    $region30: #{tpu_custom_call.1} parent=1 // pred_check
      _
    $region31: #{tpu_custom_call.1} parent=1 // pred_check_branch
      %50 = sbr.rel (0) target = $region33
    $region32: #{tpu_custom_call.1} parent=1 // pred_region
      %51 = dma.done [#allocation3], 16384
    $region33: #{tpu_custom_call.1} parent=1 // pred_fallthru
      _
    // Predicated region
    $region34: #{tpu_custom_call.1} parent=1 // pred_check
      _
    $region35: #{tpu_custom_call.1} parent=1 // pred_check_branch
      %53 = sbr.rel (0) target = $region37
    $region36: #{tpu_custom_call.1} parent=1 // pred_region
      %54 = dma.done [#allocation6], 4096
    $region37: #{tpu_custom_call.1} parent=1 // pred_fallthru
      _
    %v56 = vld [vmem:[%s0] sm:$0xff]
    %v57 = vld [vmem:[%s0 + $0x8] sm:$0xff]
    %v58 = vld [vmem:[%s0 + $0x10] sm:$0xff]
    %v59 = vld [vmem:[%s0 + $0x18] sm:$0xff]
    %v60 = vld [vmem:[%s0 + $0x20] sm:$0xff]
    %v61 = vld [vmem:[%s0 + $0x28] sm:$0xff]
    %v62 = vld [vmem:[%s0 + $0x30] sm:$0xff]
    %v63 = vld [vmem:[%s0 + $0x38] sm:$0xff]
    %v64 = vld [vmem:[%s2] sm:$0xf]
    %v65 = vld [vmem:[%s1] ss:$2 sm:$0xf]
    %67 = vset.pattern.permute.xlu0 0
    %68 = vperm.xlu0 %67, %v56
    %v69 = vpop.permute.xlu0 %68
    %72 = vset.pattern.permute.xlu0 0
    %73 = vperm.xlu0 %72, %v57
    %v74 = vpop.permute.xlu0 %73
    %77 = vset.pattern.permute.xlu0 0
    %78 = vperm.xlu0 %77, %v58
    %v79 = vpop.permute.xlu0 %78
    %82 = vset.pattern.permute.xlu0 0
    %83 = vperm.xlu0 %82, %v59
    %v84 = vpop.permute.xlu0 %83
    %87 = vset.pattern.permute.xlu0 0
    %88 = vperm.xlu0 %87, %v60
    %v89 = vpop.permute.xlu0 %88
    %92 = vset.pattern.permute.xlu0 0
    %93 = vperm.xlu0 %92, %v61
    %v94 = vpop.permute.xlu0 %93
    %97 = vset.pattern.permute.xlu0 0
    %98 = vperm.xlu0 %97, %v62
    %v99 = vpop.permute.xlu0 %98
    %102 = vset.pattern.permute.xlu0 0
    %103 = vperm.xlu0 %102, %v63
    %v104 = vpop.permute.xlu0 %103
    %v107 = vlaneseq
    %v108 = vshrl.u32 %v107, 7
    %v109 = vsub.s32 0, %v108
    %v110 = vrot.slane %v65, %v109
    %v111 = vlaneseq
    %v112 = vshrl.u32 %v111, 7
    %v113 = vsub.s32 1, %v112
    %v114 = vrot.slane %v65, %v113
    %v115 = vlaneseq
    %v116 = vshrl.u32 %v115, 7
    %v117 = vsub.s32 2, %v116
    %v118 = vrot.slane %v65, %v117
    %v119 = vlaneseq
    %v120 = vshrl.u32 %v119, 7
    %v121 = vsub.s32 3, %v120
    %v122 = vrot.slane %v65, %v121
    %v127 = vmul.f32 %v69, %v110
    %v128 = vmul.f32 %v69, %v114
    %v129 = vmul.f32 %v69, %v118
    %v130 = vmul.f32 %v69, %v122
    %v131 = vmul.f32 %v74, %v110
    %v132 = vmul.f32 %v74, %v114
    %v133 = vmul.f32 %v74, %v118
    %v134 = vmul.f32 %v74, %v122
    %v135 = vmul.f32 %v79, %v110
    %v136 = vmul.f32 %v79, %v114
    %v137 = vmul.f32 %v79, %v118
    %v138 = vmul.f32 %v79, %v122
    %v139 = vmul.f32 %v84, %v110
    %v140 = vmul.f32 %v84, %v114
    %v141 = vmul.f32 %v84, %v118
    %v142 = vmul.f32 %v84, %v122
    %v143 = vmul.f32 %v89, %v110
    %v144 = vmul.f32 %v89, %v114
    %v145 = vmul.f32 %v89, %v118
    %v146 = vmul.f32 %v89, %v122
    %v147 = vmul.f32 %v94, %v110
    %v148 = vmul.f32 %v94, %v114
    %v149 = vmul.f32 %v94, %v118
    %v150 = vmul.f32 %v94, %v122
    %v151 = vmul.f32 %v99, %v110
    %v152 = vmul.f32 %v99, %v114
    %v153 = vmul.f32 %v99, %v118
    %v154 = vmul.f32 %v99, %v122
    %v155 = vmul.f32 %v104, %v110
    %v156 = vmul.f32 %v104, %v114
    %v157 = vmul.f32 %v104, %v118
    %v158 = vmul.f32 %v104, %v122
    %v160 = vlaneseq
    %v161 = vshrl.u32 %v160, 7
    %v162 = vsub.s32 0, %v161
    %v163 = vrot.slane %v64, %v162
    %v164 = vlaneseq
    %v165 = vshrl.u32 %v164, 7
    %v166 = vsub.s32 1, %v165
    %v167 = vrot.slane %v64, %v166
    %v168 = vlaneseq
    %v169 = vshrl.u32 %v168, 7
    %v170 = vsub.s32 2, %v169
    %v171 = vrot.slane %v64, %v170
    %v172 = vlaneseq
    %v173 = vshrl.u32 %v172, 7
    %v174 = vsub.s32 3, %v173
    %v175 = vrot.slane %v64, %v174
    %v180 = vadd.f32 %v163, %v127
    %v181 = vadd.f32 %v167, %v128
    %v182 = vadd.f32 %v171, %v129
    %v183 = vadd.f32 %v175, %v130
    %v184 = vadd.f32 %v163, %v131
    %v185 = vadd.f32 %v167, %v132
    %v186 = vadd.f32 %v171, %v133
    %v187 = vadd.f32 %v175, %v134
    %v188 = vadd.f32 %v163, %v135
    %v189 = vadd.f32 %v167, %v136
    %v190 = vadd.f32 %v171, %v137
    %v191 = vadd.f32 %v175, %v138
    %v192 = vadd.f32 %v163, %v139
    %v193 = vadd.f32 %v167, %v140
    %v194 = vadd.f32 %v171, %v141
    %v195 = vadd.f32 %v175, %v142
    %v196 = vadd.f32 %v163, %v143
    %v197 = vadd.f32 %v167, %v144
    %v198 = vadd.f32 %v171, %v145
    %v199 = vadd.f32 %v175, %v146
    %v200 = vadd.f32 %v163, %v147
    %v201 = vadd.f32 %v167, %v148
    %v202 = vadd.f32 %v171, %v149
    %v203 = vadd.f32 %v175, %v150
    %v204 = vadd.f32 %v163, %v151
    %v205 = vadd.f32 %v167, %v152
    %v206 = vadd.f32 %v171, %v153
    %v207 = vadd.f32 %v175, %v154
    %v208 = vadd.f32 %v163, %v155
    %v209 = vadd.f32 %v167, %v156
    %v210 = vadd.f32 %v171, %v157
    %v211 = vadd.f32 %v175, %v158
    %s212 = scalar_lea.vmem %s1, 1
    %v213 = vld [vmem:[%s212] ss:$2 sm:$0xf]
    %214 = vset.pattern.permute.xlu0 1
    %215 = vperm.xlu0 %214, %v56
    %v216 = vpop.permute.xlu0 %215
    %218 = vset.pattern.permute.xlu0 1
    %219 = vperm.xlu0 %218, %v57
    %v220 = vpop.permute.xlu0 %219
    %222 = vset.pattern.permute.xlu0 1
    %223 = vperm.xlu0 %222, %v58
    %v224 = vpop.permute.xlu0 %223
    %226 = vset.pattern.permute.xlu0 1
    %227 = vperm.xlu0 %226, %v59
    %v228 = vpop.permute.xlu0 %227
    %230 = vset.pattern.permute.xlu0 1
    %231 = vperm.xlu0 %230, %v60
    %v232 = vpop.permute.xlu0 %231
    %234 = vset.pattern.permute.xlu0 1
    %235 = vperm.xlu0 %234, %v61
    %v236 = vpop.permute.xlu0 %235
    %238 = vset.pattern.permute.xlu0 1
    %239 = vperm.xlu0 %238, %v62
    %v240 = vpop.permute.xlu0 %239
    %242 = vset.pattern.permute.xlu0 1
    %243 = vperm.xlu0 %242, %v63
    %v244 = vpop.permute.xlu0 %243
    %v247 = vlaneseq
    %v248 = vshrl.u32 %v247, 7
    %v249 = vsub.s32 0, %v248
    %v250 = vrot.slane %v213, %v249
    %v251 = vlaneseq
    %v252 = vshrl.u32 %v251, 7
    %v253 = vsub.s32 1, %v252
    %v254 = vrot.slane %v213, %v253
    %v255 = vlaneseq
    %v256 = vshrl.u32 %v255, 7
    %v257 = vsub.s32 2, %v256
    %v258 = vrot.slane %v213, %v257
    %v259 = vlaneseq
    %v260 = vshrl.u32 %v259, 7
    %v261 = vsub.s32 3, %v260
    %v262 = vrot.slane %v213, %v261
    %v267 = vmul.f32 %v216, %v250
    %v268 = vmul.f32 %v216, %v254
    %v269 = vmul.f32 %v216, %v258
    %v270 = vmul.f32 %v216, %v262
    %v271 = vmul.f32 %v220, %v250
    %v272 = vmul.f32 %v220, %v254
    %v273 = vmul.f32 %v220, %v258
    %v274 = vmul.f32 %v220, %v262
    %v275 = vmul.f32 %v224, %v250
    %v276 = vmul.f32 %v224, %v254
    %v277 = vmul.f32 %v224, %v258
    %v278 = vmul.f32 %v224, %v262
    %v279 = vmul.f32 %v228, %v250
    %v280 = vmul.f32 %v228, %v254
    %v281 = vmul.f32 %v228, %v258
    %v282 = vmul.f32 %v228, %v262
    %v283 = vmul.f32 %v232, %v250
    %v284 = vmul.f32 %v232, %v254
    %v285 = vmul.f32 %v232, %v258
    %v286 = vmul.f32 %v232, %v262
    %v287 = vmul.f32 %v236, %v250
    %v288 = vmul.f32 %v236, %v254
    %v289 = vmul.f32 %v236, %v258
    %v290 = vmul.f32 %v236, %v262
    %v291 = vmul.f32 %v240, %v250
    %v292 = vmul.f32 %v240, %v254
    %v293 = vmul.f32 %v240, %v258
    %v294 = vmul.f32 %v240, %v262
    %v295 = vmul.f32 %v244, %v250
    %v296 = vmul.f32 %v244, %v254
    %v297 = vmul.f32 %v244, %v258
    %v298 = vmul.f32 %v244, %v262
    %v299 = vadd.f32 %v180, %v267
    %v300 = vadd.f32 %v181, %v268
    %v301 = vadd.f32 %v182, %v269
    %v302 = vadd.f32 %v183, %v270
    %v303 = vadd.f32 %v184, %v271
    %v304 = vadd.f32 %v185, %v272
    %v305 = vadd.f32 %v186, %v273
    %v306 = vadd.f32 %v187, %v274
    %v307 = vadd.f32 %v188, %v275
    %v308 = vadd.f32 %v189, %v276
    %v309 = vadd.f32 %v190, %v277
    %v310 = vadd.f32 %v191, %v278
    %v311 = vadd.f32 %v192, %v279
    %v312 = vadd.f32 %v193, %v280
    %v313 = vadd.f32 %v194, %v281
    %v314 = vadd.f32 %v195, %v282
    %v315 = vadd.f32 %v196, %v283
    %v316 = vadd.f32 %v197, %v284
    %v317 = vadd.f32 %v198, %v285
    %v318 = vadd.f32 %v199, %v286
    %v319 = vadd.f32 %v200, %v287
    %v320 = vadd.f32 %v201, %v288
    %v321 = vadd.f32 %v202, %v289
    %v322 = vadd.f32 %v203, %v290
    %v323 = vadd.f32 %v204, %v291
    %v324 = vadd.f32 %v205, %v292
    %v325 = vadd.f32 %v206, %v293
    %v326 = vadd.f32 %v207, %v294
    %v327 = vadd.f32 %v208, %v295
    %v328 = vadd.f32 %v209, %v296
    %v329 = vadd.f32 %v210, %v297
    %v330 = vadd.f32 %v211, %v298
    %v331 = vmax.f32 %v299, 0.0
    %v332 = vmax.f32 %v300, 0.0
    %v333 = vmax.f32 %v301, 0.0
    %v334 = vmax.f32 %v302, 0.0
    %v335 = vmax.f32 %v303, 0.0
    %v336 = vmax.f32 %v304, 0.0
    %v337 = vmax.f32 %v305, 0.0
    %v338 = vmax.f32 %v306, 0.0
    %v339 = vmax.f32 %v307, 0.0
    %v340 = vmax.f32 %v308, 0.0
    %v341 = vmax.f32 %v309, 0.0
    %v342 = vmax.f32 %v310, 0.0
    %v343 = vmax.f32 %v311, 0.0
    %v344 = vmax.f32 %v312, 0.0
    %v345 = vmax.f32 %v313, 0.0
    %v346 = vmax.f32 %v314, 0.0
    %v347 = vmax.f32 %v315, 0.0
    %v348 = vmax.f32 %v316, 0.0
    %v349 = vmax.f32 %v317, 0.0
    %v350 = vmax.f32 %v318, 0.0
    %v351 = vmax.f32 %v319, 0.0
    %v352 = vmax.f32 %v320, 0.0
    %v353 = vmax.f32 %v321, 0.0
    %v354 = vmax.f32 %v322, 0.0
    %v355 = vmax.f32 %v323, 0.0
    %v356 = vmax.f32 %v324, 0.0
    %v357 = vmax.f32 %v325, 0.0
    %v358 = vmax.f32 %v326, 0.0
    %v359 = vmax.f32 %v327, 0.0
    %v360 = vmax.f32 %v328, 0.0
    %v361 = vmax.f32 %v329, 0.0
    %v362 = vmax.f32 %v330, 0.0
    %v363 = vpack.c.bf16 %v335, %v331
    %v364 = vpack.c.bf16 %v336, %v332
    %v365 = vpack.c.bf16 %v337, %v333
    %v366 = vpack.c.bf16 %v338, %v334
    %v367 = vpack.c.bf16 %v343, %v339
    %v368 = vpack.c.bf16 %v344, %v340
    %v369 = vpack.c.bf16 %v345, %v341
    %v370 = vpack.c.bf16 %v346, %v342
    %v371 = vpack.c.bf16 %v351, %v347
    %v372 = vpack.c.bf16 %v352, %v348
    %v373 = vpack.c.bf16 %v353, %v349
    %v374 = vpack.c.bf16 %v354, %v350
    %v375 = vpack.c.bf16 %v359, %v355
    %v376 = vpack.c.bf16 %v360, %v356
    %v377 = vpack.c.bf16 %v361, %v357
    %v378 = vpack.c.bf16 %v362, %v358
    %v379 = vld [vmem:[#allocation2] sm:$0xff]
    %v380 = vld [vmem:[#allocation2 + $0x8] sm:$0xff]
    %v381 = vld [vmem:[#allocation2 + $0x10] sm:$0xff]
    %v382 = vld [vmem:[#allocation2 + $0x18] sm:$0xff]
    %v383 = vld [vmem:[#allocation2 + $0x20] sm:$0xff]
    %v384 = vld [vmem:[#allocation2 + $0x28] sm:$0xff]
    %v385 = vld [vmem:[#allocation2 + $0x30] sm:$0xff]
    %v386 = vld [vmem:[#allocation2 + $0x38] sm:$0xff]
    %v387 = vld [vmem:[#allocation2 + $0x40] sm:$0xff]
    %v388 = vld [vmem:[#allocation2 + $0x48] sm:$0xff]
    %v389 = vld [vmem:[#allocation2 + $0x50] sm:$0xff]
    %v390 = vld [vmem:[#allocation2 + $0x58] sm:$0xff]
    %v391 = vld [vmem:[#allocation2 + $0x60] sm:$0xff]
    %v392 = vld [vmem:[#allocation2 + $0x68] sm:$0xff]
    %v393 = vld [vmem:[#allocation2 + $0x70] sm:$0xff]
    %v394 = vld [vmem:[#allocation2 + $0x78] sm:$0xff]
    %v395 = vld [vmem:[#allocation2 + $0x80] sm:$0xff]
    %v396 = vld [vmem:[#allocation2 + $0x88] sm:$0xff]
    %v397 = vld [vmem:[#allocation2 + $0x90] sm:$0xff]
    %v398 = vld [vmem:[#allocation2 + $0x98] sm:$0xff]
    %v399 = vld [vmem:[#allocation2 + $0xa0] sm:$0xff]
    %v400 = vld [vmem:[#allocation2 + $0xa8] sm:$0xff]
    %v401 = vld [vmem:[#allocation2 + $0xb0] sm:$0xff]
    %v402 = vld [vmem:[#allocation2 + $0xb8] sm:$0xff]
    %v403 = vld [vmem:[#allocation2 + $0xc0] sm:$0xff]
    %v404 = vld [vmem:[#allocation2 + $0xc8] sm:$0xff]
    %v405 = vld [vmem:[#allocation2 + $0xd0] sm:$0xff]
    %v406 = vld [vmem:[#allocation2 + $0xd8] sm:$0xff]
    %v407 = vld [vmem:[#allocation2 + $0xe0] sm:$0xff]
    %v408 = vld [vmem:[#allocation2 + $0xe8] sm:$0xff]
    %v409 = vld [vmem:[#allocation2 + $0xf0] sm:$0xff]
    %v410 = vld [vmem:[#allocation2 + $0xf8] sm:$0xff]
    %v411 = vld [vmem:[#allocation2 + $0x100] sm:$0xff]
    %v412 = vld [vmem:[#allocation2 + $0x108] sm:$0xff]
    %v413 = vld [vmem:[#allocation2 + $0x110] sm:$0xff]
    %v414 = vld [vmem:[#allocation2 + $0x118] sm:$0xff]
    %v415 = vld [vmem:[#allocation2 + $0x120] sm:$0xff]
    %v416 = vld [vmem:[#allocation2 + $0x128] sm:$0xff]
    %v417 = vld [vmem:[#allocation2 + $0x130] sm:$0xff]
    %v418 = vld [vmem:[#allocation2 + $0x138] sm:$0xff]
    %v419 = vld [vmem:[#allocation2 + $0x140] sm:$0xff]
    %v420 = vld [vmem:[#allocation2 + $0x148] sm:$0xff]
    %v421 = vld [vmem:[#allocation2 + $0x150] sm:$0xff]
    %v422 = vld [vmem:[#allocation2 + $0x158] sm:$0xff]
    %v423 = vld [vmem:[#allocation2 + $0x160] sm:$0xff]
    %v424 = vld [vmem:[#allocation2 + $0x168] sm:$0xff]
    %v425 = vld [vmem:[#allocation2 + $0x170] sm:$0xff]
    %v426 = vld [vmem:[#allocation2 + $0x178] sm:$0xff]
    %v427 = vld [vmem:[#allocation2 + $0x180] sm:$0xff]
    %v428 = vld [vmem:[#allocation2 + $0x188] sm:$0xff]
    %v429 = vld [vmem:[#allocation2 + $0x190] sm:$0xff]
    %v430 = vld [vmem:[#allocation2 + $0x198] sm:$0xff]
    %v431 = vld [vmem:[#allocation2 + $0x1a0] sm:$0xff]
    %v432 = vld [vmem:[#allocation2 + $0x1a8] sm:$0xff]
    %v433 = vld [vmem:[#allocation2 + $0x1b0] sm:$0xff]
    %v434 = vld [vmem:[#allocation2 + $0x1b8] sm:$0xff]
    %v435 = vld [vmem:[#allocation2 + $0x1c0] sm:$0xff]
    %v436 = vld [vmem:[#allocation2 + $0x1c8] sm:$0xff]
    %v437 = vld [vmem:[#allocation2 + $0x1d0] sm:$0xff]
    %v438 = vld [vmem:[#allocation2 + $0x1d8] sm:$0xff]
    %v439 = vld [vmem:[#allocation2 + $0x1e0] sm:$0xff]
    %v440 = vld [vmem:[#allocation2 + $0x1e8] sm:$0xff]
    %v441 = vld [vmem:[#allocation2 + $0x1f0] sm:$0xff]
    %v442 = vld [vmem:[#allocation2 + $0x1f8] sm:$0xff]
    %v443 = vld [vmem:[#allocation2 + $0x200] sm:$0xff]
    %v444 = vld [vmem:[#allocation2 + $0x208] sm:$0xff]
    %v445 = vld [vmem:[#allocation2 + $0x210] sm:$0xff]
    %v446 = vld [vmem:[#allocation2 + $0x218] sm:$0xff]
    %v447 = vld [vmem:[#allocation2 + $0x220] sm:$0xff]
    %v448 = vld [vmem:[#allocation2 + $0x228] sm:$0xff]
    %v449 = vld [vmem:[#allocation2 + $0x230] sm:$0xff]
    %v450 = vld [vmem:[#allocation2 + $0x238] sm:$0xff]
    %v451 = vld [vmem:[#allocation2 + $0x240] sm:$0xff]
    %v452 = vld [vmem:[#allocation2 + $0x248] sm:$0xff]
    %v453 = vld [vmem:[#allocation2 + $0x250] sm:$0xff]
    %v454 = vld [vmem:[#allocation2 + $0x258] sm:$0xff]
    %v455 = vld [vmem:[#allocation2 + $0x260] sm:$0xff]
    %v456 = vld [vmem:[#allocation2 + $0x268] sm:$0xff]
    %v457 = vld [vmem:[#allocation2 + $0x270] sm:$0xff]
    %v458 = vld [vmem:[#allocation2 + $0x278] sm:$0xff]
    %v459 = vld [vmem:[#allocation2 + $0x280] sm:$0xff]
    %v460 = vld [vmem:[#allocation2 + $0x288] sm:$0xff]
    %v461 = vld [vmem:[#allocation2 + $0x290] sm:$0xff]
    %v462 = vld [vmem:[#allocation2 + $0x298] sm:$0xff]
    %v463 = vld [vmem:[#allocation2 + $0x2a0] sm:$0xff]
    %v464 = vld [vmem:[#allocation2 + $0x2a8] sm:$0xff]
    %v465 = vld [vmem:[#allocation2 + $0x2b0] sm:$0xff]
    %v466 = vld [vmem:[#allocation2 + $0x2b8] sm:$0xff]
    %v467 = vld [vmem:[#allocation2 + $0x2c0] sm:$0xff]
    %v468 = vld [vmem:[#allocation2 + $0x2c8] sm:$0xff]
    %v469 = vld [vmem:[#allocation2 + $0x2d0] sm:$0xff]
    %v470 = vld [vmem:[#allocation2 + $0x2d8] sm:$0xff]
    %v471 = vld [vmem:[#allocation2 + $0x2e0] sm:$0xff]
    %v472 = vld [vmem:[#allocation2 + $0x2e8] sm:$0xff]
    %v473 = vld [vmem:[#allocation2 + $0x2f0] sm:$0xff]
    %v474 = vld [vmem:[#allocation2 + $0x2f8] sm:$0xff]
    %v475 = vld [vmem:[#allocation2 + $0x300] sm:$0xff]
    %v476 = vld [vmem:[#allocation2 + $0x308] sm:$0xff]
    %v477 = vld [vmem:[#allocation2 + $0x310] sm:$0xff]
    %v478 = vld [vmem:[#allocation2 + $0x318] sm:$0xff]
    %v479 = vld [vmem:[#allocation2 + $0x320] sm:$0xff]
    %v480 = vld [vmem:[#allocation2 + $0x328] sm:$0xff]
    %v481 = vld [vmem:[#allocation2 + $0x330] sm:$0xff]
    %v482 = vld [vmem:[#allocation2 + $0x338] sm:$0xff]
    %v483 = vld [vmem:[#allocation2 + $0x340] sm:$0xff]
    %v484 = vld [vmem:[#allocation2 + $0x348] sm:$0xff]
    %v485 = vld [vmem:[#allocation2 + $0x350] sm:$0xff]
    %v486 = vld [vmem:[#allocation2 + $0x358] sm:$0xff]
    %v487 = vld [vmem:[#allocation2 + $0x360] sm:$0xff]
    %v488 = vld [vmem:[#allocation2 + $0x368] sm:$0xff]
    %v489 = vld [vmem:[#allocation2 + $0x370] sm:$0xff]
    %v490 = vld [vmem:[#allocation2 + $0x378] sm:$0xff]
    %v491 = vld [vmem:[#allocation2 + $0x380] sm:$0xff]
    %v492 = vld [vmem:[#allocation2 + $0x388] sm:$0xff]
    %v493 = vld [vmem:[#allocation2 + $0x390] sm:$0xff]
    %v494 = vld [vmem:[#allocation2 + $0x398] sm:$0xff]
    %v495 = vld [vmem:[#allocation2 + $0x3a0] sm:$0xff]
    %v496 = vld [vmem:[#allocation2 + $0x3a8] sm:$0xff]
    %v497 = vld [vmem:[#allocation2 + $0x3b0] sm:$0xff]
    %v498 = vld [vmem:[#allocation2 + $0x3b8] sm:$0xff]
    %v499 = vld [vmem:[#allocation2 + $0x3c0] sm:$0xff]
    %v500 = vld [vmem:[#allocation2 + $0x3c8] sm:$0xff]
    %v501 = vld [vmem:[#allocation2 + $0x3d0] sm:$0xff]
    %v502 = vld [vmem:[#allocation2 + $0x3d8] sm:$0xff]
    %v503 = vld [vmem:[#allocation2 + $0x3e0] sm:$0xff]
    %v504 = vld [vmem:[#allocation2 + $0x3e8] sm:$0xff]
    %v505 = vld [vmem:[#allocation2 + $0x3f0] sm:$0xff]
    %v506 = vld [vmem:[#allocation2 + $0x3f8] sm:$0xff]
    %v507 = vld [vmem:[%s4] sm:$0xf]
    %v509 = vlaneseq
    %v510 = vshrl.u32 %v509, 7
    %v511 = vsub.s32 0, %v510
    %v512 = vrot.slane %v507, %v511
    %v513 = vlaneseq
    %v514 = vshrl.u32 %v513, 7
    %v515 = vsub.s32 1, %v514
    %v516 = vrot.slane %v507, %v515
    %v517 = vlaneseq
    %v518 = vshrl.u32 %v517, 7
    %v519 = vsub.s32 2, %v518
    %v520 = vrot.slane %v507, %v519
    %v521 = vlaneseq
    %v522 = vshrl.u32 %v521, 7
    %v523 = vsub.s32 3, %v522
    %v524 = vrot.slane %v507, %v523
    %v657 = vunpack.c.l.b16 %v379
    %v658 = vunpack.c.h.b16 %v379
    %v659 = vunpack.c.l.b16 %v380
    %v660 = vunpack.c.h.b16 %v380
    %v661 = vunpack.c.l.b16 %v381
    %v662 = vunpack.c.h.b16 %v381
    %v663 = vunpack.c.l.b16 %v382
    %v664 = vunpack.c.h.b16 %v382
    %v665 = vunpack.c.l.b16 %v383
    %v666 = vunpack.c.h.b16 %v383
    %v667 = vunpack.c.l.b16 %v384
    %v668 = vunpack.c.h.b16 %v384
    %v669 = vunpack.c.l.b16 %v385
    %v670 = vunpack.c.h.b16 %v385
    %v671 = vunpack.c.l.b16 %v386
    %v672 = vunpack.c.h.b16 %v386
    %v673 = vunpack.c.l.b16 %v387
    %v674 = vunpack.c.h.b16 %v387
    %v675 = vunpack.c.l.b16 %v388
    %v676 = vunpack.c.h.b16 %v388
    %v677 = vunpack.c.l.b16 %v389
    %v678 = vunpack.c.h.b16 %v389
    %v679 = vunpack.c.l.b16 %v390
    %v680 = vunpack.c.h.b16 %v390
    %v681 = vunpack.c.l.b16 %v391
    %v682 = vunpack.c.h.b16 %v391
    %v683 = vunpack.c.l.b16 %v392
    %v684 = vunpack.c.h.b16 %v392
    %v685 = vunpack.c.l.b16 %v393
    %v686 = vunpack.c.h.b16 %v393
    %v687 = vunpack.c.l.b16 %v394
    %v688 = vunpack.c.h.b16 %v394
    %v689 = vunpack.c.l.b16 %v395
    %v690 = vunpack.c.h.b16 %v395
    %v691 = vunpack.c.l.b16 %v396
    %v692 = vunpack.c.h.b16 %v396
    %v693 = vunpack.c.l.b16 %v397
    %v694 = vunpack.c.h.b16 %v397
    %v695 = vunpack.c.l.b16 %v398
    %v696 = vunpack.c.h.b16 %v398
    %v697 = vunpack.c.l.b16 %v399
    %v698 = vunpack.c.h.b16 %v399
    %v699 = vunpack.c.l.b16 %v400
    %v700 = vunpack.c.h.b16 %v400
    %v701 = vunpack.c.l.b16 %v401
    %v702 = vunpack.c.h.b16 %v401
    %v703 = vunpack.c.l.b16 %v402
    %v704 = vunpack.c.h.b16 %v402
    %v705 = vunpack.c.l.b16 %v403
    %v706 = vunpack.c.h.b16 %v403
    %v707 = vunpack.c.l.b16 %v404
    %v708 = vunpack.c.h.b16 %v404
    %v709 = vunpack.c.l.b16 %v405
    %v710 = vunpack.c.h.b16 %v405
    %v711 = vunpack.c.l.b16 %v406
    %v712 = vunpack.c.h.b16 %v406
    %v713 = vunpack.c.l.b16 %v407
    %v714 = vunpack.c.h.b16 %v407
    %v715 = vunpack.c.l.b16 %v408
    %v716 = vunpack.c.h.b16 %v408
    %v717 = vunpack.c.l.b16 %v409
    %v718 = vunpack.c.h.b16 %v409
    %v719 = vunpack.c.l.b16 %v410
    %v720 = vunpack.c.h.b16 %v410
    %v721 = vunpack.c.l.b16 %v411
    %v722 = vunpack.c.h.b16 %v411
    %v723 = vunpack.c.l.b16 %v412
    %v724 = vunpack.c.h.b16 %v412
    %v725 = vunpack.c.l.b16 %v413
    %v726 = vunpack.c.h.b16 %v413
    %v727 = vunpack.c.l.b16 %v414
    %v728 = vunpack.c.h.b16 %v414
    %v729 = vunpack.c.l.b16 %v415
    %v730 = vunpack.c.h.b16 %v415
    %v731 = vunpack.c.l.b16 %v416
    %v732 = vunpack.c.h.b16 %v416
    %v733 = vunpack.c.l.b16 %v417
    %v734 = vunpack.c.h.b16 %v417
    %v735 = vunpack.c.l.b16 %v418
    %v736 = vunpack.c.h.b16 %v418
    %v737 = vunpack.c.l.b16 %v419
    %v738 = vunpack.c.h.b16 %v419
    %v739 = vunpack.c.l.b16 %v420
    %v740 = vunpack.c.h.b16 %v420
    %v741 = vunpack.c.l.b16 %v421
    %v742 = vunpack.c.h.b16 %v421
    %v743 = vunpack.c.l.b16 %v422
    %v744 = vunpack.c.h.b16 %v422
    %v745 = vunpack.c.l.b16 %v423
    %v746 = vunpack.c.h.b16 %v423
    %v747 = vunpack.c.l.b16 %v424
    %v748 = vunpack.c.h.b16 %v424
    %v749 = vunpack.c.l.b16 %v425
    %v750 = vunpack.c.h.b16 %v425
    %v751 = vunpack.c.l.b16 %v426
    %v752 = vunpack.c.h.b16 %v426
    %v753 = vunpack.c.l.b16 %v427
    %v754 = vunpack.c.h.b16 %v427
    %v755 = vunpack.c.l.b16 %v428
    %v756 = vunpack.c.h.b16 %v428
    %v757 = vunpack.c.l.b16 %v429
    %v758 = vunpack.c.h.b16 %v429
    %v759 = vunpack.c.l.b16 %v430
    %v760 = vunpack.c.h.b16 %v430
    %v761 = vunpack.c.l.b16 %v431
    %v762 = vunpack.c.h.b16 %v431
    %v763 = vunpack.c.l.b16 %v432
    %v764 = vunpack.c.h.b16 %v432
    %v765 = vunpack.c.l.b16 %v433
    %v766 = vunpack.c.h.b16 %v433
    %v767 = vunpack.c.l.b16 %v434
    %v768 = vunpack.c.h.b16 %v434
    %v769 = vunpack.c.l.b16 %v435
    %v770 = vunpack.c.h.b16 %v435
    %v771 = vunpack.c.l.b16 %v436
    %v772 = vunpack.c.h.b16 %v436
    %v773 = vunpack.c.l.b16 %v437
    %v774 = vunpack.c.h.b16 %v437
    %v775 = vunpack.c.l.b16 %v438
    %v776 = vunpack.c.h.b16 %v438
    %v777 = vunpack.c.l.b16 %v439
    %v778 = vunpack.c.h.b16 %v439
    %v779 = vunpack.c.l.b16 %v440
    %v780 = vunpack.c.h.b16 %v440
    %v781 = vunpack.c.l.b16 %v441
    %v782 = vunpack.c.h.b16 %v441
    %v783 = vunpack.c.l.b16 %v442
    %v784 = vunpack.c.h.b16 %v442
    %v785 = vunpack.c.l.b16 %v443
    %v786 = vunpack.c.h.b16 %v443
    %v787 = vunpack.c.l.b16 %v444
    %v788 = vunpack.c.h.b16 %v444
    %v789 = vunpack.c.l.b16 %v445
    %v790 = vunpack.c.h.b16 %v445
    %v791 = vunpack.c.l.b16 %v446
    %v792 = vunpack.c.h.b16 %v446
    %v793 = vunpack.c.l.b16 %v447
    %v794 = vunpack.c.h.b16 %v447
    %v795 = vunpack.c.l.b16 %v448
    %v796 = vunpack.c.h.b16 %v448
    %v797 = vunpack.c.l.b16 %v449
    %v798 = vunpack.c.h.b16 %v449
    %v799 = vunpack.c.l.b16 %v450
    %v800 = vunpack.c.h.b16 %v450
    %v801 = vunpack.c.l.b16 %v451
    %v802 = vunpack.c.h.b16 %v451
    %v803 = vunpack.c.l.b16 %v452
    %v804 = vunpack.c.h.b16 %v452
    %v805 = vunpack.c.l.b16 %v453
    %v806 = vunpack.c.h.b16 %v453
    %v807 = vunpack.c.l.b16 %v454
    %v808 = vunpack.c.h.b16 %v454
    %v809 = vunpack.c.l.b16 %v455
    %v810 = vunpack.c.h.b16 %v455
    %v811 = vunpack.c.l.b16 %v456
    %v812 = vunpack.c.h.b16 %v456
    %v813 = vunpack.c.l.b16 %v457
    %v814 = vunpack.c.h.b16 %v457
    %v815 = vunpack.c.l.b16 %v458
    %v816 = vunpack.c.h.b16 %v458
    %v817 = vunpack.c.l.b16 %v459
    %v818 = vunpack.c.h.b16 %v459
    %v819 = vunpack.c.l.b16 %v460
    %v820 = vunpack.c.h.b16 %v460
    %v821 = vunpack.c.l.b16 %v461
    %v822 = vunpack.c.h.b16 %v461
    %v823 = vunpack.c.l.b16 %v462
    %v824 = vunpack.c.h.b16 %v462
    %v825 = vunpack.c.l.b16 %v463
    %v826 = vunpack.c.h.b16 %v463
    %v827 = vunpack.c.l.b16 %v464
    %v828 = vunpack.c.h.b16 %v464
    %v829 = vunpack.c.l.b16 %v465
    %v830 = vunpack.c.h.b16 %v465
    %v831 = vunpack.c.l.b16 %v466
    %v832 = vunpack.c.h.b16 %v466
    %v833 = vunpack.c.l.b16 %v467
    %v834 = vunpack.c.h.b16 %v467
    %v835 = vunpack.c.l.b16 %v468
    %v836 = vunpack.c.h.b16 %v468
    %v837 = vunpack.c.l.b16 %v469
    %v838 = vunpack.c.h.b16 %v469
    %v839 = vunpack.c.l.b16 %v470
    %v840 = vunpack.c.h.b16 %v470
    %v841 = vunpack.c.l.b16 %v471
    %v842 = vunpack.c.h.b16 %v471
    %v843 = vunpack.c.l.b16 %v472
    %v844 = vunpack.c.h.b16 %v472
    %v845 = vunpack.c.l.b16 %v473
    %v846 = vunpack.c.h.b16 %v473
    %v847 = vunpack.c.l.b16 %v474
    %v848 = vunpack.c.h.b16 %v474
    %v849 = vunpack.c.l.b16 %v475
    %v850 = vunpack.c.h.b16 %v475
    %v851 = vunpack.c.l.b16 %v476
    %v852 = vunpack.c.h.b16 %v476
    %v853 = vunpack.c.l.b16 %v477
    %v854 = vunpack.c.h.b16 %v477
    %v855 = vunpack.c.l.b16 %v478
    %v856 = vunpack.c.h.b16 %v478
    %v857 = vunpack.c.l.b16 %v479
    %v858 = vunpack.c.h.b16 %v479
    %v859 = vunpack.c.l.b16 %v480
    %v860 = vunpack.c.h.b16 %v480
    %v861 = vunpack.c.l.b16 %v481
    %v862 = vunpack.c.h.b16 %v481
    %v863 = vunpack.c.l.b16 %v482
    %v864 = vunpack.c.h.b16 %v482
    %v865 = vunpack.c.l.b16 %v483
    %v866 = vunpack.c.h.b16 %v483
    %v867 = vunpack.c.l.b16 %v484
    %v868 = vunpack.c.h.b16 %v484
    %v869 = vunpack.c.l.b16 %v485
    %v870 = vunpack.c.h.b16 %v485
    %v871 = vunpack.c.l.b16 %v486
    %v872 = vunpack.c.h.b16 %v486
    %v873 = vunpack.c.l.b16 %v487
    %v874 = vunpack.c.h.b16 %v487
    %v875 = vunpack.c.l.b16 %v488
    %v876 = vunpack.c.h.b16 %v488
    %v877 = vunpack.c.l.b16 %v489
    %v878 = vunpack.c.h.b16 %v489
    %v879 = vunpack.c.l.b16 %v490
    %v880 = vunpack.c.h.b16 %v490
    %v881 = vunpack.c.l.b16 %v491
    %v882 = vunpack.c.h.b16 %v491
    %v883 = vunpack.c.l.b16 %v492
    %v884 = vunpack.c.h.b16 %v492
    %v885 = vunpack.c.l.b16 %v493
    %v886 = vunpack.c.h.b16 %v493
    %v887 = vunpack.c.l.b16 %v494
    %v888 = vunpack.c.h.b16 %v494
    %v889 = vunpack.c.l.b16 %v495
    %v890 = vunpack.c.h.b16 %v495
    %v891 = vunpack.c.l.b16 %v496
    %v892 = vunpack.c.h.b16 %v496
    %v893 = vunpack.c.l.b16 %v497
    %v894 = vunpack.c.h.b16 %v497
    %v895 = vunpack.c.l.b16 %v498
    %v896 = vunpack.c.h.b16 %v498
    %v897 = vunpack.c.l.b16 %v499
    %v898 = vunpack.c.h.b16 %v499
    %v899 = vunpack.c.l.b16 %v500
    %v900 = vunpack.c.h.b16 %v500
    %v901 = vunpack.c.l.b16 %v501
    %v902 = vunpack.c.h.b16 %v501
    %v903 = vunpack.c.l.b16 %v502
    %v904 = vunpack.c.h.b16 %v502
    %v905 = vunpack.c.l.b16 %v503
    %v906 = vunpack.c.h.b16 %v503
    %v907 = vunpack.c.l.b16 %v504
    %v908 = vunpack.c.h.b16 %v504
    %v909 = vunpack.c.l.b16 %v505
    %v910 = vunpack.c.h.b16 %v505
    %v911 = vunpack.c.l.b16 %v506
    %v912 = vunpack.c.h.b16 %v506
    %v913 = vpack.c.b16 %v661, %v657
    %v914 = vpack.c.b16 %v662, %v658
    %v915 = vpack.c.b16 %v663, %v659
    %v916 = vpack.c.b16 %v664, %v660
    %v917 = vpack.c.b16 %v669, %v665
    %v918 = vpack.c.b16 %v670, %v666
    %v919 = vpack.c.b16 %v671, %v667
    %v920 = vpack.c.b16 %v672, %v668
    %v921 = vpack.c.b16 %v677, %v673
    %v922 = vpack.c.b16 %v678, %v674
    %v923 = vpack.c.b16 %v679, %v675
    %v924 = vpack.c.b16 %v680, %v676
    %v925 = vpack.c.b16 %v685, %v681
    %v926 = vpack.c.b16 %v686, %v682
    %v927 = vpack.c.b16 %v687, %v683
    %v928 = vpack.c.b16 %v688, %v684
    %v929 = vpack.c.b16 %v693, %v689
    %v930 = vpack.c.b16 %v694, %v690
    %v931 = vpack.c.b16 %v695, %v691
    %v932 = vpack.c.b16 %v696, %v692
    %v933 = vpack.c.b16 %v701, %v697
    %v934 = vpack.c.b16 %v702, %v698
    %v935 = vpack.c.b16 %v703, %v699
    %v936 = vpack.c.b16 %v704, %v700
    %v937 = vpack.c.b16 %v709, %v705
    %v938 = vpack.c.b16 %v710, %v706
    %v939 = vpack.c.b16 %v711, %v707
    %v940 = vpack.c.b16 %v712, %v708
    %v941 = vpack.c.b16 %v717, %v713
    %v942 = vpack.c.b16 %v718, %v714
    %v943 = vpack.c.b16 %v719, %v715
    %v944 = vpack.c.b16 %v720, %v716
    %v945 = vpack.c.b16 %v725, %v721
    %v946 = vpack.c.b16 %v726, %v722
    %v947 = vpack.c.b16 %v727, %v723
    %v948 = vpack.c.b16 %v728, %v724
    %v949 = vpack.c.b16 %v733, %v729
    %v950 = vpack.c.b16 %v734, %v730
    %v951 = vpack.c.b16 %v735, %v731
    %v952 = vpack.c.b16 %v736, %v732
    %v953 = vpack.c.b16 %v741, %v737
    %v954 = vpack.c.b16 %v742, %v738
    %v955 = vpack.c.b16 %v743, %v739
    %v956 = vpack.c.b16 %v744, %v740
    %v957 = vpack.c.b16 %v749, %v745
    %v958 = vpack.c.b16 %v750, %v746
    %v959 = vpack.c.b16 %v751, %v747
    %v960 = vpack.c.b16 %v752, %v748
    %v961 = vpack.c.b16 %v757, %v753
    %v962 = vpack.c.b16 %v758, %v754
    %v963 = vpack.c.b16 %v759, %v755
    %v964 = vpack.c.b16 %v760, %v756
    %v965 = vpack.c.b16 %v765, %v761
    %v966 = vpack.c.b16 %v766, %v762
    %v967 = vpack.c.b16 %v767, %v763
    %v968 = vpack.c.b16 %v768, %v764
    %v969 = vpack.c.b16 %v773, %v769
    %v970 = vpack.c.b16 %v774, %v770
    %v971 = vpack.c.b16 %v775, %v771
    %v972 = vpack.c.b16 %v776, %v772
    %v973 = vpack.c.b16 %v781, %v777
    %v974 = vpack.c.b16 %v782, %v778
    %v975 = vpack.c.b16 %v783, %v779
    %v976 = vpack.c.b16 %v784, %v780
    %v977 = vpack.c.b16 %v789, %v785
    %v978 = vpack.c.b16 %v790, %v786
    %v979 = vpack.c.b16 %v791, %v787
    %v980 = vpack.c.b16 %v792, %v788
    %v981 = vpack.c.b16 %v797, %v793
    %v982 = vpack.c.b16 %v798, %v794
    %v983 = vpack.c.b16 %v799, %v795
    %v984 = vpack.c.b16 %v800, %v796
    %v985 = vpack.c.b16 %v805, %v801
    %v986 = vpack.c.b16 %v806, %v802
    %v987 = vpack.c.b16 %v807, %v803
    %v988 = vpack.c.b16 %v808, %v804
    %v989 = vpack.c.b16 %v813, %v809
    %v990 = vpack.c.b16 %v814, %v810
    %v991 = vpack.c.b16 %v815, %v811
    %v992 = vpack.c.b16 %v816, %v812
    %v993 = vpack.c.b16 %v821, %v817
    %v994 = vpack.c.b16 %v822, %v818
    %v995 = vpack.c.b16 %v823, %v819
    %v996 = vpack.c.b16 %v824, %v820
    %v997 = vpack.c.b16 %v829, %v825
    %v998 = vpack.c.b16 %v830, %v826
    %v999 = vpack.c.b16 %v831, %v827
    %v1000 = vpack.c.b16 %v832, %v828
    %v1001 = vpack.c.b16 %v837, %v833
    %v1002 = vpack.c.b16 %v838, %v834
    %v1003 = vpack.c.b16 %v839, %v835
    %v1004 = vpack.c.b16 %v840, %v836
    %v1005 = vpack.c.b16 %v845, %v841
    %v1006 = vpack.c.b16 %v846, %v842
    %v1007 = vpack.c.b16 %v847, %v843
    %v1008 = vpack.c.b16 %v848, %v844
    %v1009 = vpack.c.b16 %v853, %v849
    %v1010 = vpack.c.b16 %v854, %v850
    %v1011 = vpack.c.b16 %v855, %v851
    %v1012 = vpack.c.b16 %v856, %v852
    %v1013 = vpack.c.b16 %v861, %v857
    %v1014 = vpack.c.b16 %v862, %v858
    %v1015 = vpack.c.b16 %v863, %v859
    %v1016 = vpack.c.b16 %v864, %v860
    %v1017 = vpack.c.b16 %v869, %v865
    %v1018 = vpack.c.b16 %v870, %v866
    %v1019 = vpack.c.b16 %v871, %v867
    %v1020 = vpack.c.b16 %v872, %v868
    %v1021 = vpack.c.b16 %v877, %v873
    %v1022 = vpack.c.b16 %v878, %v874
    %v1023 = vpack.c.b16 %v879, %v875
    %v1024 = vpack.c.b16 %v880, %v876
    %v1025 = vpack.c.b16 %v885, %v881
    %v1026 = vpack.c.b16 %v886, %v882
    %v1027 = vpack.c.b16 %v887, %v883
    %v1028 = vpack.c.b16 %v888, %v884
    %v1029 = vpack.c.b16 %v893, %v889
    %v1030 = vpack.c.b16 %v894, %v890
    %v1031 = vpack.c.b16 %v895, %v891
    %v1032 = vpack.c.b16 %v896, %v892
    %v1033 = vpack.c.b16 %v901, %v897
    %v1034 = vpack.c.b16 %v902, %v898
    %v1035 = vpack.c.b16 %v903, %v899
    %v1036 = vpack.c.b16 %v904, %v900
    %v1037 = vpack.c.b16 %v909, %v905
    %v1038 = vpack.c.b16 %v910, %v906
    %v1039 = vpack.c.b16 %v911, %v907
    %v1040 = vpack.c.b16 %v912, %v908
    %1169 = vmatprep.subr.bf16.mxu0 %v914
    %1170 = vmatpush1.bf16.msra.mxu0 %v913
    %1171 = vmatprep.subr.bf16.mxu0 %v918
    %1172 = vmatpush1.bf16.msra.mxu0 %v917
    %1173 = vmatprep.subr.bf16.mxu0 %v922
    %1174 = vmatpush1.bf16.msra.mxu0 %v921
    %1175 = vmatprep.subr.bf16.mxu0 %v926
    %1176 = vmatpush1.bf16.msra.mxu0 %v925
    %1177 = vmatprep.subr.bf16.mxu0 %v930
    %1178 = vmatpush1.bf16.msra.mxu0 %v929
    %1179 = vmatprep.subr.bf16.mxu0 %v934
    %1180 = vmatpush1.bf16.msra.mxu0 %v933
    %1181 = vmatprep.subr.bf16.mxu0 %v938
    %1182 = vmatpush1.bf16.msra.mxu0 %v937
    %1183 = vmatprep.subr.bf16.mxu0 %v942
    %1184 = vmatpush1.bf16.msra.mxu0 %v941
    %1185 = vmatprep.subr.bf16.mxu0 %v946
    %1186 = vmatpush1.bf16.msra.mxu0 %v945
    %1187 = vmatprep.subr.bf16.mxu0 %v950
    %1188 = vmatpush1.bf16.msra.mxu0 %v949
    %1189 = vmatprep.subr.bf16.mxu0 %v954
    %1190 = vmatpush1.bf16.msra.mxu0 %v953
    %1191 = vmatprep.subr.bf16.mxu0 %v958
    %1192 = vmatpush1.bf16.msra.mxu0 %v957
    %1193 = vmatprep.subr.bf16.mxu0 %v962
    %1194 = vmatpush1.bf16.msra.mxu0 %v961
    %1195 = vmatprep.subr.bf16.mxu0 %v966
    %1196 = vmatpush1.bf16.msra.mxu0 %v965
    %1197 = vmatprep.subr.bf16.mxu0 %v970
    %1198 = vmatpush1.bf16.msra.mxu0 %v969
    %1199 = vmatprep.subr.bf16.mxu0 %v974
    %1200 = vmatpush1.bf16.msra.mxu0 %v973
    %1201 = vmatprep.mubr.bf16.mxu0 %v364
    %1202 = vmatmul.mubr.bf16.gmra.mrb[0].mxu0 %v363
    %v1203 = vpop.f32.mrb[0].mxu0
    %v1204 = vadd.f32 %v512, %v1203
    %v1205 = vpop.f32.mrb[0].mxu0
    %v1206 = vadd.f32 %v516, %v1205
    %v1207 = vpop.f32.mrb[0].mxu0
    %v1208 = vadd.f32 %v512, %v1207
    %v1209 = vpop.f32.mrb[0].mxu0
    %v1210 = vadd.f32 %v516, %v1209
    %1211 = vmatprep.mubr.bf16.mxu0 %v368
    %1212 = vmatmul.mubr.bf16.gmra.mrb[0].mxu0 %v367
    %v1213 = vpop.f32.mrb[0].mxu0
    %v1214 = vadd.f32 %v512, %v1213
    %v1215 = vpop.f32.mrb[0].mxu0
    %v1216 = vadd.f32 %v516, %v1215
    %v1217 = vpop.f32.mrb[0].mxu0
    %v1218 = vadd.f32 %v512, %v1217
    %v1219 = vpop.f32.mrb[0].mxu0
    %v1220 = vadd.f32 %v516, %v1219
    %1221 = vmatprep.mubr.bf16.mxu0 %v372
    %1222 = vmatmul.mubr.bf16.gmra.mrb[0].mxu0 %v371
    %v1223 = vpop.f32.mrb[0].mxu0
    %v1224 = vadd.f32 %v512, %v1223
    %v1225 = vpop.f32.mrb[0].mxu0
    %v1226 = vadd.f32 %v516, %v1225
    %v1227 = vpop.f32.mrb[0].mxu0
    %v1228 = vadd.f32 %v512, %v1227
    %v1229 = vpop.f32.mrb[0].mxu0
    %v1230 = vadd.f32 %v516, %v1229
    %1231 = vmatprep.mubr.bf16.mxu0 %v376
    %1232 = vmatmul.mubr.bf16.gmra.mrb[0].mxu0 %v375
    %v1233 = vpop.f32.mrb[0].mxu0
    %v1234 = vadd.f32 %v512, %v1233
    %v1235 = vpop.f32.mrb[0].mxu0
    %v1236 = vadd.f32 %v516, %v1235
    %v1237 = vpop.f32.mrb[0].mxu0
    %v1238 = vadd.f32 %v512, %v1237
    %v1239 = vpop.f32.mrb[0].mxu0
    %v1240 = vadd.f32 %v516, %v1239
    %1241 = vdwg.mxu0
    %1242 = vmatprep.subr.bf16.mxu0 %v978
    %1243 = vmatpush1.bf16.msra.mxu0 %v977
    %1244 = vmatprep.subr.bf16.mxu0 %v982
    %1245 = vmatpush1.bf16.msra.mxu0 %v981
    %1246 = vmatprep.subr.bf16.mxu0 %v986
    %1247 = vmatpush1.bf16.msra.mxu0 %v985
    %1248 = vmatprep.subr.bf16.mxu0 %v990
    %1249 = vmatpush1.bf16.msra.mxu0 %v989
    %1250 = vmatprep.subr.bf16.mxu0 %v994
    %1251 = vmatpush1.bf16.msra.mxu0 %v993
    %1252 = vmatprep.subr.bf16.mxu0 %v998
    %1253 = vmatpush1.bf16.msra.mxu0 %v997
    %1254 = vmatprep.subr.bf16.mxu0 %v1002
    %1255 = vmatpush1.bf16.msra.mxu0 %v1001
    %1256 = vmatprep.subr.bf16.mxu0 %v1006
    %1257 = vmatpush1.bf16.msra.mxu0 %v1005
    %1258 = vmatprep.subr.bf16.mxu0 %v1010
    %1259 = vmatpush1.bf16.msra.mxu0 %v1009
    %1260 = vmatprep.subr.bf16.mxu0 %v1014
    %1261 = vmatpush1.bf16.msra.mxu0 %v1013
    %1262 = vmatprep.subr.bf16.mxu0 %v1018
    %1263 = vmatpush1.bf16.msra.mxu0 %v1017
    %1264 = vmatprep.subr.bf16.mxu0 %v1022
    %1265 = vmatpush1.bf16.msra.mxu0 %v1021
    %1266 = vmatprep.subr.bf16.mxu0 %v1026
    %1267 = vmatpush1.bf16.msra.mxu0 %v1025
    %1268 = vmatprep.subr.bf16.mxu0 %v1030
    %1269 = vmatpush1.bf16.msra.mxu0 %v1029
    %1270 = vmatprep.subr.bf16.mxu0 %v1034
    %1271 = vmatpush1.bf16.msra.mxu0 %v1033
    %1272 = vmatprep.subr.bf16.mxu0 %v1038
    %1273 = vmatpush1.bf16.msra.mxu0 %v1037
    %1274 = vmatprep.mubr.bf16.mxu0 %v366
    %1275 = vmatmul.mubr.bf16.gmra.mrb[0].mxu0 %v365
    %v1276 = vpop.f32.mrb[0].mxu0
    %v1277 = vadd.f32 %v1204, %v1276
    %v1278 = vpop.f32.mrb[0].mxu0
    %v1279 = vadd.f32 %v1206, %v1278
    %v1280 = vpop.f32.mrb[0].mxu0
    %v1281 = vadd.f32 %v1208, %v1280
    %v1282 = vpop.f32.mrb[0].mxu0
    %v1283 = vadd.f32 %v1210, %v1282
    %1284 = vmatprep.mubr.bf16.mxu0 %v370
    %1285 = vmatmul.mubr.bf16.gmra.mrb[0].mxu0 %v369
    %v1286 = vpop.f32.mrb[0].mxu0
    %v1287 = vadd.f32 %v1214, %v1286
    %v1288 = vpop.f32.mrb[0].mxu0
    %v1289 = vadd.f32 %v1216, %v1288
    %v1290 = vpop.f32.mrb[0].mxu0
    %v1291 = vadd.f32 %v1218, %v1290
    %v1292 = vpop.f32.mrb[0].mxu0
    %v1293 = vadd.f32 %v1220, %v1292
    %1294 = vmatprep.mubr.bf16.mxu0 %v374
    %1295 = vmatmul.mubr.bf16.gmra.mrb[0].mxu0 %v373
    %v1296 = vpop.f32.mrb[0].mxu0
    %v1297 = vadd.f32 %v1224, %v1296
    %v1298 = vpop.f32.mrb[0].mxu0
    %v1299 = vadd.f32 %v1226, %v1298
    %v1300 = vpop.f32.mrb[0].mxu0
    %v1301 = vadd.f32 %v1228, %v1300
    %v1302 = vpop.f32.mrb[0].mxu0
    %v1303 = vadd.f32 %v1230, %v1302
    %1304 = vmatprep.mubr.bf16.mxu0 %v378
    %1305 = vmatmul.mubr.bf16.gmra.mrb[0].mxu0 %v377
    %v1306 = vpop.f32.mrb[0].mxu0
    %v1307 = vadd.f32 %v1234, %v1306
    %v1308 = vpop.f32.mrb[0].mxu0
    %v1309 = vadd.f32 %v1236, %v1308
    %v1310 = vpop.f32.mrb[0].mxu0
    %v1311 = vadd.f32 %v1238, %v1310
    %v1312 = vpop.f32.mrb[0].mxu0
    %v1313 = vadd.f32 %v1240, %v1312
    %1314 = vdwg.mxu0
    %1315 = vmatprep.subr.bf16.mxu0 %v916
    %1316 = vmatpush1.bf16.msra.mxu0 %v915
    %1317 = vmatprep.subr.bf16.mxu0 %v920
    %1318 = vmatpush1.bf16.msra.mxu0 %v919
    %1319 = vmatprep.subr.bf16.mxu0 %v924
    %1320 = vmatpush1.bf16.msra.mxu0 %v923
    %1321 = vmatprep.subr.bf16.mxu0 %v928
    %1322 = vmatpush1.bf16.msra.mxu0 %v927
    %1323 = vmatprep.subr.bf16.mxu0 %v932
    %1324 = vmatpush1.bf16.msra.mxu0 %v931
    %1325 = vmatprep.subr.bf16.mxu0 %v936
    %1326 = vmatpush1.bf16.msra.mxu0 %v935
    %1327 = vmatprep.subr.bf16.mxu0 %v940
    %1328 = vmatpush1.bf16.msra.mxu0 %v939
    %1329 = vmatprep.subr.bf16.mxu0 %v944
    %1330 = vmatpush1.bf16.msra.mxu0 %v943
    %1331 = vmatprep.subr.bf16.mxu0 %v948
    %1332 = vmatpush1.bf16.msra.mxu0 %v947
    %1333 = vmatprep.subr.bf16.mxu0 %v952
    %1334 = vmatpush1.bf16.msra.mxu0 %v951
    %1335 = vmatprep.subr.bf16.mxu0 %v956
    %1336 = vmatpush1.bf16.msra.mxu0 %v955
    %1337 = vmatprep.subr.bf16.mxu0 %v960
    %1338 = vmatpush1.bf16.msra.mxu0 %v959
    %1339 = vmatprep.subr.bf16.mxu0 %v964
    %1340 = vmatpush1.bf16.msra.mxu0 %v963
    %1341 = vmatprep.subr.bf16.mxu0 %v968
    %1342 = vmatpush1.bf16.msra.mxu0 %v967
    %1343 = vmatprep.subr.bf16.mxu0 %v972
    %1344 = vmatpush1.bf16.msra.mxu0 %v971
    %1345 = vmatprep.subr.bf16.mxu0 %v976
    %1346 = vmatpush1.bf16.msra.mxu0 %v975
    %1347 = vmatprep.mubr.bf16.mxu0 %v364
    %1348 = vmatmul.mubr.bf16.gmra.mrb[0].mxu0 %v363
    %v1349 = vpop.f32.mrb[0].mxu0
    %v1350 = vadd.f32 %v520, %v1349
    %v1351 = vpop.f32.mrb[0].mxu0
    %v1352 = vadd.f32 %v524, %v1351
    %v1353 = vpop.f32.mrb[0].mxu0
    %v1354 = vadd.f32 %v520, %v1353
    %v1355 = vpop.f32.mrb[0].mxu0
    %v1356 = vadd.f32 %v524, %v1355
    %1357 = vmatprep.mubr.bf16.mxu0 %v368
    %1358 = vmatmul.mubr.bf16.gmra.mrb[0].mxu0 %v367
    %v1359 = vpop.f32.mrb[0].mxu0
    %v1360 = vadd.f32 %v520, %v1359
    %v1361 = vpop.f32.mrb[0].mxu0
    %v1362 = vadd.f32 %v524, %v1361
    %v1363 = vpop.f32.mrb[0].mxu0
    %v1364 = vadd.f32 %v520, %v1363
    %v1365 = vpop.f32.mrb[0].mxu0
    %v1366 = vadd.f32 %v524, %v1365
    %1367 = vmatprep.mubr.bf16.mxu0 %v372
    %1368 = vmatmul.mubr.bf16.gmra.mrb[0].mxu0 %v371
    %v1369 = vpop.f32.mrb[0].mxu0
    %v1370 = vadd.f32 %v520, %v1369
    %v1371 = vpop.f32.mrb[0].mxu0
    %v1372 = vadd.f32 %v524, %v1371
    %v1373 = vpop.f32.mrb[0].mxu0
    %v1374 = vadd.f32 %v520, %v1373
    %v1375 = vpop.f32.mrb[0].mxu0
    %v1376 = vadd.f32 %v524, %v1375
    %1377 = vmatprep.mubr.bf16.mxu0 %v376
    %1378 = vmatmul.mubr.bf16.gmra.mrb[0].mxu0 %v375
    %v1379 = vpop.f32.mrb[0].mxu0
    %v1380 = vadd.f32 %v520, %v1379
    %v1381 = vpop.f32.mrb[0].mxu0
    %v1382 = vadd.f32 %v524, %v1381
    %v1383 = vpop.f32.mrb[0].mxu0
    %v1384 = vadd.f32 %v520, %v1383
    %v1385 = vpop.f32.mrb[0].mxu0
    %v1386 = vadd.f32 %v524, %v1385
    %1387 = vdwg.mxu0
    %1388 = vmatprep.subr.bf16.mxu0 %v980
    %1389 = vmatpush1.bf16.msra.mxu0 %v979
    %1390 = vmatprep.subr.bf16.mxu0 %v984
    %1391 = vmatpush1.bf16.msra.mxu0 %v983
    %1392 = vmatprep.subr.bf16.mxu0 %v988
    %1393 = vmatpush1.bf16.msra.mxu0 %v987
    %1394 = vmatprep.subr.bf16.mxu0 %v992
    %1395 = vmatpush1.bf16.msra.mxu0 %v991
    %1396 = vmatprep.subr.bf16.mxu0 %v996
    %1397 = vmatpush1.bf16.msra.mxu0 %v995
    %1398 = vmatprep.subr.bf16.mxu0 %v1000
    %1399 = vmatpush1.bf16.msra.mxu0 %v999
    %1400 = vmatprep.subr.bf16.mxu0 %v1004
    %1401 = vmatpush1.bf16.msra.mxu0 %v1003
    %1402 = vmatprep.subr.bf16.mxu0 %v1008
    %1403 = vmatpush1.bf16.msra.mxu0 %v1007
    %1404 = vmatprep.subr.bf16.mxu0 %v1012
    %1405 = vmatpush1.bf16.msra.mxu0 %v1011
    %1406 = vmatprep.subr.bf16.mxu0 %v1016
    %1407 = vmatpush1.bf16.msra.mxu0 %v1015
    %1408 = vmatprep.subr.bf16.mxu0 %v1020
    %1409 = vmatpush1.bf16.msra.mxu0 %v1019
    %1410 = vmatprep.subr.bf16.mxu0 %v1024
    %1411 = vmatpush1.bf16.msra.mxu0 %v1023
    %1412 = vmatprep.subr.bf16.mxu0 %v1028
    %1413 = vmatpush1.bf16.msra.mxu0 %v1027
    %1414 = vmatprep.subr.bf16.mxu0 %v1032
    %1415 = vmatpush1.bf16.msra.mxu0 %v1031
    %1416 = vmatprep.subr.bf16.mxu0 %v1036
    %1417 = vmatpush1.bf16.msra.mxu0 %v1035
    %1418 = vmatprep.subr.bf16.mxu0 %v1040
    %1419 = vmatpush1.bf16.msra.mxu0 %v1039
    %1420 = vmatprep.mubr.bf16.mxu0 %v366
    %1421 = vmatmul.mubr.bf16.gmra.mrb[0].mxu0 %v365
    %v1422 = vpop.f32.mrb[0].mxu0
    %v1423 = vadd.f32 %v1350, %v1422
    %v1424 = vpop.f32.mrb[0].mxu0
    %v1425 = vadd.f32 %v1352, %v1424
    %v1426 = vpop.f32.mrb[0].mxu0
    %v1427 = vadd.f32 %v1354, %v1426
    %v1428 = vpop.f32.mrb[0].mxu0
    %v1429 = vadd.f32 %v1356, %v1428
    %1430 = vmatprep.mubr.bf16.mxu0 %v370
    %1431 = vmatmul.mubr.bf16.gmra.mrb[0].mxu0 %v369
    %v1432 = vpop.f32.mrb[0].mxu0
    %v1433 = vadd.f32 %v1360, %v1432
    %v1434 = vpop.f32.mrb[0].mxu0
    %v1435 = vadd.f32 %v1362, %v1434
    %v1436 = vpop.f32.mrb[0].mxu0
    %v1437 = vadd.f32 %v1364, %v1436
    %v1438 = vpop.f32.mrb[0].mxu0
    %v1439 = vadd.f32 %v1366, %v1438
    %1440 = vmatprep.mubr.bf16.mxu0 %v374
    %1441 = vmatmul.mubr.bf16.gmra.mrb[0].mxu0 %v373
    %v1442 = vpop.f32.mrb[0].mxu0
    %v1443 = vadd.f32 %v1370, %v1442
    %v1444 = vpop.f32.mrb[0].mxu0
    %v1445 = vadd.f32 %v1372, %v1444
    %v1446 = vpop.f32.mrb[0].mxu0
    %v1447 = vadd.f32 %v1374, %v1446
    %v1448 = vpop.f32.mrb[0].mxu0
    %v1449 = vadd.f32 %v1376, %v1448
    %1450 = vmatprep.mubr.bf16.mxu0 %v378
    %1451 = vmatmul.mubr.bf16.gmra.mrb[0].mxu0 %v377
    %v1452 = vpop.f32.mrb[0].mxu0
    %v1453 = vadd.f32 %v1380, %v1452
    %v1454 = vpop.f32.mrb[0].mxu0
    %v1455 = vadd.f32 %v1382, %v1454
    %v1456 = vpop.f32.mrb[0].mxu0
    %v1457 = vadd.f32 %v1384, %v1456
    %v1458 = vpop.f32.mrb[0].mxu0
    %v1459 = vadd.f32 %v1386, %v1458
    %1460 = vdwg.mxu0
    %v1461 = vmax.f32 %v1277, 0.0
    %v1462 = vmax.f32 %v1279, 0.0
    %v1463 = vmax.f32 %v1423, 0.0
    %v1464 = vmax.f32 %v1425, 0.0
    %v1465 = vmax.f32 %v1281, 0.0
    %v1466 = vmax.f32 %v1283, 0.0
    %v1467 = vmax.f32 %v1427, 0.0
    %v1468 = vmax.f32 %v1429, 0.0
    %v1469 = vmax.f32 %v1287, 0.0
    %v1470 = vmax.f32 %v1289, 0.0
    %v1471 = vmax.f32 %v1433, 0.0
    %v1472 = vmax.f32 %v1435, 0.0
    %v1473 = vmax.f32 %v1291, 0.0
    %v1474 = vmax.f32 %v1293, 0.0
    %v1475 = vmax.f32 %v1437, 0.0
    %v1476 = vmax.f32 %v1439, 0.0
    %v1477 = vmax.f32 %v1297, 0.0
    %v1478 = vmax.f32 %v1299, 0.0
    %v1479 = vmax.f32 %v1443, 0.0
    %v1480 = vmax.f32 %v1445, 0.0
    %v1481 = vmax.f32 %v1301, 0.0
    %v1482 = vmax.f32 %v1303, 0.0
    %v1483 = vmax.f32 %v1447, 0.0
    %v1484 = vmax.f32 %v1449, 0.0
    %v1485 = vmax.f32 %v1307, 0.0
    %v1486 = vmax.f32 %v1309, 0.0
    %v1487 = vmax.f32 %v1453, 0.0
    %v1488 = vmax.f32 %v1455, 0.0
    %v1489 = vmax.f32 %v1311, 0.0
    %v1490 = vmax.f32 %v1313, 0.0
    %v1491 = vmax.f32 %v1457, 0.0
    %v1492 = vmax.f32 %v1459, 0.0
    %v1493 = vpack.c.bf16 %v1465, %v1461
    %v1494 = vpack.c.bf16 %v1466, %v1462
    %v1495 = vpack.c.bf16 %v1467, %v1463
    %v1496 = vpack.c.bf16 %v1468, %v1464
    %v1497 = vpack.c.bf16 %v1473, %v1469
    %v1498 = vpack.c.bf16 %v1474, %v1470
    %v1499 = vpack.c.bf16 %v1475, %v1471
    %v1500 = vpack.c.bf16 %v1476, %v1472
    %v1501 = vpack.c.bf16 %v1481, %v1477
    %v1502 = vpack.c.bf16 %v1482, %v1478
    %v1503 = vpack.c.bf16 %v1483, %v1479
    %v1504 = vpack.c.bf16 %v1484, %v1480
    %v1505 = vpack.c.bf16 %v1489, %v1485
    %v1506 = vpack.c.bf16 %v1490, %v1486
    %v1507 = vpack.c.bf16 %v1491, %v1487
    %v1508 = vpack.c.bf16 %v1492, %v1488
    %v1509 = vld [vmem:[#allocation5] sm:$0xf]
    %v1510 = vld [vmem:[#allocation5 + $0x4] sm:$0xf]
    %v1511 = vld [vmem:[#allocation5 + $0x8] sm:$0xf]
    %v1512 = vld [vmem:[#allocation5 + $0xc] sm:$0xf]
    %v1513 = vld [vmem:[#allocation5 + $0x10] sm:$0xf]
    %v1514 = vld [vmem:[#allocation5 + $0x14] sm:$0xf]
    %v1515 = vld [vmem:[#allocation5 + $0x18] sm:$0xf]
    %v1516 = vld [vmem:[#allocation5 + $0x1c] sm:$0xf]
    %v1517 = vld [vmem:[#allocation5 + $0x20] sm:$0xf]
    %v1518 = vld [vmem:[#allocation5 + $0x24] sm:$0xf]
    %v1519 = vld [vmem:[#allocation5 + $0x28] sm:$0xf]
    %v1520 = vld [vmem:[#allocation5 + $0x2c] sm:$0xf]
    %v1521 = vld [vmem:[#allocation5 + $0x30] sm:$0xf]
    %v1522 = vld [vmem:[#allocation5 + $0x34] sm:$0xf]
    %v1523 = vld [vmem:[#allocation5 + $0x38] sm:$0xf]
    %v1524 = vld [vmem:[#allocation5 + $0x3c] sm:$0xf]
    %v1525 = vld [vmem:[#allocation5 + $0x40] sm:$0xf]
    %v1526 = vld [vmem:[#allocation5 + $0x44] sm:$0xf]
    %v1527 = vld [vmem:[#allocation5 + $0x48] sm:$0xf]
    %v1528 = vld [vmem:[#allocation5 + $0x4c] sm:$0xf]
    %v1529 = vld [vmem:[#allocation5 + $0x50] sm:$0xf]
    %v1530 = vld [vmem:[#allocation5 + $0x54] sm:$0xf]
    %v1531 = vld [vmem:[#allocation5 + $0x58] sm:$0xf]
    %v1532 = vld [vmem:[#allocation5 + $0x5c] sm:$0xf]
    %v1533 = vld [vmem:[#allocation5 + $0x60] sm:$0xf]
    %v1534 = vld [vmem:[#allocation5 + $0x64] sm:$0xf]
    %v1535 = vld [vmem:[#allocation5 + $0x68] sm:$0xf]
    %v1536 = vld [vmem:[#allocation5 + $0x6c] sm:$0xf]
    %v1537 = vld [vmem:[#allocation5 + $0x70] sm:$0xf]
    %v1538 = vld [vmem:[#allocation5 + $0x74] sm:$0xf]
    %v1539 = vld [vmem:[#allocation5 + $0x78] sm:$0xf]
    %v1540 = vld [vmem:[#allocation5 + $0x7c] sm:$0xf]
    %v1541 = vld [vmem:[#allocation5 + $0x80] sm:$0xf]
    %v1542 = vld [vmem:[#allocation5 + $0x84] sm:$0xf]
    %v1543 = vld [vmem:[#allocation5 + $0x88] sm:$0xf]
    %v1544 = vld [vmem:[#allocation5 + $0x8c] sm:$0xf]
    %v1545 = vld [vmem:[#allocation5 + $0x90] sm:$0xf]
    %v1546 = vld [vmem:[#allocation5 + $0x94] sm:$0xf]
    %v1547 = vld [vmem:[#allocation5 + $0x98] sm:$0xf]
    %v1548 = vld [vmem:[#allocation5 + $0x9c] sm:$0xf]
    %v1549 = vld [vmem:[#allocation5 + $0xa0] sm:$0xf]
    %v1550 = vld [vmem:[#allocation5 + $0xa4] sm:$0xf]
    %v1551 = vld [vmem:[#allocation5 + $0xa8] sm:$0xf]
    %v1552 = vld [vmem:[#allocation5 + $0xac] sm:$0xf]
    %v1553 = vld [vmem:[#allocation5 + $0xb0] sm:$0xf]
    %v1554 = vld [vmem:[#allocation5 + $0xb4] sm:$0xf]
    %v1555 = vld [vmem:[#allocation5 + $0xb8] sm:$0xf]
    %v1556 = vld [vmem:[#allocation5 + $0xbc] sm:$0xf]
    %v1557 = vld [vmem:[#allocation5 + $0xc0] sm:$0xf]
    %v1558 = vld [vmem:[#allocation5 + $0xc4] sm:$0xf]
    %v1559 = vld [vmem:[#allocation5 + $0xc8] sm:$0xf]
    %v1560 = vld [vmem:[#allocation5 + $0xcc] sm:$0xf]
    %v1561 = vld [vmem:[#allocation5 + $0xd0] sm:$0xf]
    %v1562 = vld [vmem:[#allocation5 + $0xd4] sm:$0xf]
    %v1563 = vld [vmem:[#allocation5 + $0xd8] sm:$0xf]
    %v1564 = vld [vmem:[#allocation5 + $0xdc] sm:$0xf]
    %v1565 = vld [vmem:[#allocation5 + $0xe0] sm:$0xf]
    %v1566 = vld [vmem:[#allocation5 + $0xe4] sm:$0xf]
    %v1567 = vld [vmem:[#allocation5 + $0xe8] sm:$0xf]
    %v1568 = vld [vmem:[#allocation5 + $0xec] sm:$0xf]
    %v1569 = vld [vmem:[#allocation5 + $0xf0] sm:$0xf]
    %v1570 = vld [vmem:[#allocation5 + $0xf4] sm:$0xf]
    %v1571 = vld [vmem:[#allocation5 + $0xf8] sm:$0xf]
    %v1572 = vld [vmem:[#allocation5 + $0xfc] sm:$0xf]
    %v1573 = vld [vmem:[%s6] sm:$0x1]
    %v1575 = vlaneseq
    %v1576 = vshrl.u32 %v1575, 7
    %v1577 = vsub.s32 0, %v1576
    %v1578 = vrot.slane %v1573, %v1577
    %v1644 = vunpack.c.l.b16 %v1509
    %v1645 = vunpack.c.l.b16 %v1510
    %v1646 = vunpack.c.l.b16 %v1511
    %v1647 = vunpack.c.l.b16 %v1512
    %v1648 = vunpack.c.l.b16 %v1513
    %v1649 = vunpack.c.l.b16 %v1514
    %v1650 = vunpack.c.l.b16 %v1515
    %v1651 = vunpack.c.l.b16 %v1516
    %v1652 = vunpack.c.l.b16 %v1517
    %v1653 = vunpack.c.l.b16 %v1518
    %v1654 = vunpack.c.l.b16 %v1519
    %v1655 = vunpack.c.l.b16 %v1520
    %v1656 = vunpack.c.l.b16 %v1521
    %v1657 = vunpack.c.l.b16 %v1522
    %v1658 = vunpack.c.l.b16 %v1523
    %v1659 = vunpack.c.l.b16 %v1524
    %v1660 = vunpack.c.l.b16 %v1525
    %v1661 = vunpack.c.l.b16 %v1526
    %v1662 = vunpack.c.l.b16 %v1527
    %v1663 = vunpack.c.l.b16 %v1528
    %v1664 = vunpack.c.l.b16 %v1529
    %v1665 = vunpack.c.l.b16 %v1530
    %v1666 = vunpack.c.l.b16 %v1531
    %v1667 = vunpack.c.l.b16 %v1532
    %v1668 = vunpack.c.l.b16 %v1533
    %v1669 = vunpack.c.l.b16 %v1534
    %v1670 = vunpack.c.l.b16 %v1535
    %v1671 = vunpack.c.l.b16 %v1536
    %v1672 = vunpack.c.l.b16 %v1537
    %v1673 = vunpack.c.l.b16 %v1538
    %v1674 = vunpack.c.l.b16 %v1539
    %v1675 = vunpack.c.l.b16 %v1540
    %v1676 = vunpack.c.l.b16 %v1541
    %v1677 = vunpack.c.l.b16 %v1542
    %v1678 = vunpack.c.l.b16 %v1543
    %v1679 = vunpack.c.l.b16 %v1544
    %v1680 = vunpack.c.l.b16 %v1545
    %v1681 = vunpack.c.l.b16 %v1546
    %v1682 = vunpack.c.l.b16 %v1547
    %v1683 = vunpack.c.l.b16 %v1548
    %v1684 = vunpack.c.l.b16 %v1549
    %v1685 = vunpack.c.l.b16 %v1550
    %v1686 = vunpack.c.l.b16 %v1551
    %v1687 = vunpack.c.l.b16 %v1552
    %v1688 = vunpack.c.l.b16 %v1553
    %v1689 = vunpack.c.l.b16 %v1554
    %v1690 = vunpack.c.l.b16 %v1555
    %v1691 = vunpack.c.l.b16 %v1556
    %v1692 = vunpack.c.l.b16 %v1557
    %v1693 = vunpack.c.l.b16 %v1558
    %v1694 = vunpack.c.l.b16 %v1559
    %v1695 = vunpack.c.l.b16 %v1560
    %v1696 = vunpack.c.l.b16 %v1561
    %v1697 = vunpack.c.l.b16 %v1562
    %v1698 = vunpack.c.l.b16 %v1563
    %v1699 = vunpack.c.l.b16 %v1564
    %v1700 = vunpack.c.l.b16 %v1565
    %v1701 = vunpack.c.l.b16 %v1566
    %v1702 = vunpack.c.l.b16 %v1567
    %v1703 = vunpack.c.l.b16 %v1568
    %v1704 = vunpack.c.l.b16 %v1569
    %v1705 = vunpack.c.l.b16 %v1570
    %v1706 = vunpack.c.l.b16 %v1571
    %v1707 = vunpack.c.l.b16 %v1572
    %v1708 = vpack.c.b16 %v1645, %v1644
    %v1709 = vpack.c.b16 %v1647, %v1646
    %v1710 = vpack.c.b16 %v1649, %v1648
    %v1711 = vpack.c.b16 %v1651, %v1650
    %v1712 = vpack.c.b16 %v1653, %v1652
    %v1713 = vpack.c.b16 %v1655, %v1654
    %v1714 = vpack.c.b16 %v1657, %v1656
    %v1715 = vpack.c.b16 %v1659, %v1658
    %v1716 = vpack.c.b16 %v1661, %v1660
    %v1717 = vpack.c.b16 %v1663, %v1662
    %v1718 = vpack.c.b16 %v1665, %v1664
    %v1719 = vpack.c.b16 %v1667, %v1666
    %v1720 = vpack.c.b16 %v1669, %v1668
    %v1721 = vpack.c.b16 %v1671, %v1670
    %v1722 = vpack.c.b16 %v1673, %v1672
    %v1723 = vpack.c.b16 %v1675, %v1674
    %v1724 = vpack.c.b16 %v1677, %v1676
    %v1725 = vpack.c.b16 %v1679, %v1678
    %v1726 = vpack.c.b16 %v1681, %v1680
    %v1727 = vpack.c.b16 %v1683, %v1682
    %v1728 = vpack.c.b16 %v1685, %v1684
    %v1729 = vpack.c.b16 %v1687, %v1686
    %v1730 = vpack.c.b16 %v1689, %v1688
    %v1731 = vpack.c.b16 %v1691, %v1690
    %v1732 = vpack.c.b16 %v1693, %v1692
    %v1733 = vpack.c.b16 %v1695, %v1694
    %v1734 = vpack.c.b16 %v1697, %v1696
    %v1735 = vpack.c.b16 %v1699, %v1698
    %v1736 = vpack.c.b16 %v1701, %v1700
    %v1737 = vpack.c.b16 %v1703, %v1702
    %v1738 = vpack.c.b16 %v1705, %v1704
    %v1739 = vpack.c.b16 %v1707, %v1706
    %1772 = vmatprep.subr.bf16.mxu0 0
    %1773 = vmatpush1.bf16.msra.mxu0 %v1708
    %1774 = vmatprep.subr.bf16.mxu0 0
    %1775 = vmatpush1.bf16.msra.mxu0 %v1709
    %1776 = vmatprep.subr.bf16.mxu0 0
    %1777 = vmatpush1.bf16.msra.mxu0 %v1710
    %1778 = vmatprep.subr.bf16.mxu0 0
    %1779 = vmatpush1.bf16.msra.mxu0 %v1711
    %1780 = vmatprep.subr.bf16.mxu0 0
    %1781 = vmatpush1.bf16.msra.mxu0 %v1712
    %1782 = vmatprep.subr.bf16.mxu0 0
    %1783 = vmatpush1.bf16.msra.mxu0 %v1713
    %1784 = vmatprep.subr.bf16.mxu0 0
    %1785 = vmatpush1.bf16.msra.mxu0 %v1714
    %1786 = vmatprep.subr.bf16.mxu0 0
    %1787 = vmatpush1.bf16.msra.mxu0 %v1715
    %1788 = vmatprep.subr.bf16.mxu0 0
    %1789 = vmatpush1.bf16.msra.mxu0 %v1716
    %1790 = vmatprep.subr.bf16.mxu0 0
    %1791 = vmatpush1.bf16.msra.mxu0 %v1717
    %1792 = vmatprep.subr.bf16.mxu0 0
    %1793 = vmatpush1.bf16.msra.mxu0 %v1718
    %1794 = vmatprep.subr.bf16.mxu0 0
    %1795 = vmatpush1.bf16.msra.mxu0 %v1719
    %1796 = vmatprep.subr.bf16.mxu0 0
    %1797 = vmatpush1.bf16.msra.mxu0 %v1720
    %1798 = vmatprep.subr.bf16.mxu0 0
    %1799 = vmatpush1.bf16.msra.mxu0 %v1721
    %1800 = vmatprep.subr.bf16.mxu0 0
    %1801 = vmatpush1.bf16.msra.mxu0 %v1722
    %1802 = vmatprep.subr.bf16.mxu0 0
    %1803 = vmatpush1.bf16.msra.mxu0 %v1723
    %1804 = vmatprep.mubr.bf16.mxu0 %v1494
    %1805 = vmatmul.mubr.bf16.gmra.mrb[0].mxu0 %v1493
    %v1806 = vpop.f32.mrb[0].mxu0
    %v1807 = vadd.f32 %v1578, %v1806
    %v1808 = vpop.f32.mrb[0].mxu0
    %v1809 = vpop.f32.mrb[0].mxu0
    %v1810 = vadd.f32 %v1578, %v1809
    %v1811 = vpop.f32.mrb[0].mxu0
    %1812 = vmatprep.mubr.bf16.mxu0 %v1498
    %1813 = vmatmul.mubr.bf16.gmra.mrb[0].mxu0 %v1497
    %v1814 = vpop.f32.mrb[0].mxu0
    %v1815 = vadd.f32 %v1578, %v1814
    %v1816 = vpop.f32.mrb[0].mxu0
    %v1817 = vpop.f32.mrb[0].mxu0
    %v1818 = vadd.f32 %v1578, %v1817
    %v1819 = vpop.f32.mrb[0].mxu0
    %1820 = vmatprep.mubr.bf16.mxu0 %v1502
    %1821 = vmatmul.mubr.bf16.gmra.mrb[0].mxu0 %v1501
    %v1822 = vpop.f32.mrb[0].mxu0
    %v1823 = vadd.f32 %v1578, %v1822
    %v1824 = vpop.f32.mrb[0].mxu0
    %v1825 = vpop.f32.mrb[0].mxu0
    %v1826 = vadd.f32 %v1578, %v1825
    %v1827 = vpop.f32.mrb[0].mxu0
    %1828 = vmatprep.mubr.bf16.mxu0 %v1506
    %1829 = vmatmul.mubr.bf16.gmra.mrb[0].mxu0 %v1505
    %v1830 = vpop.f32.mrb[0].mxu0
    %v1831 = vadd.f32 %v1578, %v1830
    %v1832 = vpop.f32.mrb[0].mxu0
    %v1833 = vpop.f32.mrb[0].mxu0
    %v1834 = vadd.f32 %v1578, %v1833
    %v1835 = vpop.f32.mrb[0].mxu0
    %1836 = vdwg.mxu0
    %1837 = vmatprep.subr.bf16.mxu0 0
    %1838 = vmatpush1.bf16.msra.mxu0 %v1724
    %1839 = vmatprep.subr.bf16.mxu0 0
    %1840 = vmatpush1.bf16.msra.mxu0 %v1725
    %1841 = vmatprep.subr.bf16.mxu0 0
    %1842 = vmatpush1.bf16.msra.mxu0 %v1726
    %1843 = vmatprep.subr.bf16.mxu0 0
    %1844 = vmatpush1.bf16.msra.mxu0 %v1727
    %1845 = vmatprep.subr.bf16.mxu0 0
    %1846 = vmatpush1.bf16.msra.mxu0 %v1728
    %1847 = vmatprep.subr.bf16.mxu0 0
    %1848 = vmatpush1.bf16.msra.mxu0 %v1729
    %1849 = vmatprep.subr.bf16.mxu0 0
    %1850 = vmatpush1.bf16.msra.mxu0 %v1730
    %1851 = vmatprep.subr.bf16.mxu0 0
    %1852 = vmatpush1.bf16.msra.mxu0 %v1731
    %1853 = vmatprep.subr.bf16.mxu0 0
    %1854 = vmatpush1.bf16.msra.mxu0 %v1732
    %1855 = vmatprep.subr.bf16.mxu0 0
    %1856 = vmatpush1.bf16.msra.mxu0 %v1733
    %1857 = vmatprep.subr.bf16.mxu0 0
    %1858 = vmatpush1.bf16.msra.mxu0 %v1734
    %1859 = vmatprep.subr.bf16.mxu0 0
    %1860 = vmatpush1.bf16.msra.mxu0 %v1735
    %1861 = vmatprep.subr.bf16.mxu0 0
    %1862 = vmatpush1.bf16.msra.mxu0 %v1736
    %1863 = vmatprep.subr.bf16.mxu0 0
    %1864 = vmatpush1.bf16.msra.mxu0 %v1737
    %1865 = vmatprep.subr.bf16.mxu0 0
    %1866 = vmatpush1.bf16.msra.mxu0 %v1738
    %1867 = vmatprep.subr.bf16.mxu0 0
    %1868 = vmatpush1.bf16.msra.mxu0 %v1739
    %1869 = vmatprep.mubr.bf16.mxu0 %v1496
    %1870 = vmatmul.mubr.bf16.gmra.mrb[0].mxu0 %v1495
    %v1871 = vpop.f32.mrb[0].mxu0
    %v1872 = vadd.f32 %v1807, %v1871
    %v1873 = vpop.f32.mrb[0].mxu0
    %v1874 = vpop.f32.mrb[0].mxu0
    %v1875 = vadd.f32 %v1810, %v1874
    %v1876 = vpop.f32.mrb[0].mxu0
    %1877 = vmatprep.mubr.bf16.mxu0 %v1500
    %1878 = vmatmul.mubr.bf16.gmra.mrb[0].mxu0 %v1499
    %v1879 = vpop.f32.mrb[0].mxu0
    %v1880 = vadd.f32 %v1815, %v1879
    %v1881 = vpop.f32.mrb[0].mxu0
    %v1882 = vpop.f32.mrb[0].mxu0
    %v1883 = vadd.f32 %v1818, %v1882
    %v1884 = vpop.f32.mrb[0].mxu0
    %1885 = vmatprep.mubr.bf16.mxu0 %v1504
    %1886 = vmatmul.mubr.bf16.gmra.mrb[0].mxu0 %v1503
    %v1887 = vpop.f32.mrb[0].mxu0
    %v1888 = vadd.f32 %v1823, %v1887
    %v1889 = vpop.f32.mrb[0].mxu0
    %v1890 = vpop.f32.mrb[0].mxu0
    %v1891 = vadd.f32 %v1826, %v1890
    %v1892 = vpop.f32.mrb[0].mxu0
    %1893 = vmatprep.mubr.bf16.mxu0 %v1508
    %1894 = vmatmul.mubr.bf16.gmra.mrb[0].mxu0 %v1507
    %v1895 = vpop.f32.mrb[0].mxu0
    %v1896 = vadd.f32 %v1831, %v1895
    %v1897 = vpop.f32.mrb[0].mxu0
    %v1898 = vpop.f32.mrb[0].mxu0
    %v1899 = vadd.f32 %v1834, %v1898
    %v1900 = vpop.f32.mrb[0].mxu0
    %1901 = vdwg.mxu0
    %v1902 = vpack.c.bf16 %v1875, %v1872
    %v1903 = vpack.c.bf16 %v1883, %v1880
    %v1904 = vpack.c.bf16 %v1891, %v1888
    %v1905 = vpack.c.bf16 %v1899, %v1896
    %v1910 = vunpack.c.l.b16 %v1902
    %v1911 = vunpack.c.h.b16 %v1902
    %v1912 = vunpack.c.l.b16 %v1903
    %v1913 = vunpack.c.h.b16 %v1903
    %v1914 = vunpack.c.l.b16 %v1904
    %v1915 = vunpack.c.h.b16 %v1904
    %v1916 = vunpack.c.l.b16 %v1905
    %v1917 = vunpack.c.h.b16 %v1905
    %v1918 = vpack.c.b16 %v1910, %v1910
    %v1919 = vpack.c.b16 %v1911, %v1911
    %v1920 = vpack.c.b16 %v1912, %v1912
    %v1921 = vpack.c.b16 %v1913, %v1913
    %v1922 = vpack.c.b16 %v1914, %v1914
    %v1923 = vpack.c.b16 %v1915, %v1915
    %v1924 = vpack.c.b16 %v1916, %v1916
    %v1925 = vpack.c.b16 %v1917, %v1917
    %1934 = vst [vmem:[#allocation7] sm:$0xf] %v1918
    %1935 = vst [vmem:[#allocation7 + $0x4] sm:$0xf] %v1919
    %1936 = vst [vmem:[#allocation7 + $0x8] sm:$0xf] %v1920
    %1937 = vst [vmem:[#allocation7 + $0xc] sm:$0xf] %v1921
    %1938 = vst [vmem:[#allocation7 + $0x10] sm:$0xf] %v1922
    %1939 = vst [vmem:[#allocation7 + $0x14] sm:$0xf] %v1923
    %1940 = vst [vmem:[#allocation7 + $0x18] sm:$0xf] %v1924
    %1941 = vst [vmem:[#allocation7 + $0x1c] sm:$0xf] %v1925
    // Predicated region
    $region38: #{tpu_custom_call.1} parent=1 // pred_check
      _
    $region39: #{tpu_custom_call.1} parent=1 // pred_check_branch
      %1943 = sbr.rel (0) target = $region41
    $region40: #{tpu_custom_call.1} parent=1 // pred_region
      %s1945 = ssub.s32 512, 512
      %1946 = vsyncadd [#allocation4], %s1945
      %s1947 = sshll.u32 [#allocation7], 4
      %s1948 = int_to_ptr.vmem [resolvable:$true] %s1947
      %1953 = dma.vmem_to_hbm [thread:$0]  %s1948, 512, %s7, [#allocation4], 64, 64, 4
    $region41: #{tpu_custom_call.1} parent=1 // pred_fallthru
      _
    // Predicated region
    $region42: #{tpu_custom_call.1} parent=1 // pred_check
      _
    $region43: #{tpu_custom_call.1} parent=1 // pred_check_branch
      %1955 = sbr.rel (0) target = $region45
    $region44: #{tpu_custom_call.1} parent=1 // pred_region
      %1956 = dma.done [#allocation4], 512
    $region45: #{tpu_custom_call.1} parent=1 // pred_fallthru
      _
    %1957 = vsyncpa [#allocation3], 1
    %1958 = vsyncpa [#allocation6], 1
    %1959 = vsyncpa [#allocation4], 1

</llo_original>
